<compile_context>
chip_gen: v6e
topology: v6e:2x2x1
jax: 0.10.0
libtpu: 0.0.40
codegen_flags: <defaults>
</compile_context>

<pallas_src>
import functools

import jax
import jax.numpy as jnp
from jax.experimental import pallas as pl
from jax.experimental.pallas import tpu as pltpu


def _tpu_generation():
    """Best-effort TPU generation from the device kind ('TPU v5e' -> 5, ...)."""
    try:
        kind = jax.devices()[0].device_kind.lower().replace(" ", "")
    except Exception:
        return 0
    for gen in (7, 6, 5, 4, 3):
        if (f"v{gen}" in kind) or (f"tpu{gen}" in kind):
            return gen
    return 0


def _mish(z, transcendental_dtype):
    # Mish(z) = z * tanh(softplus(z)).  Single-exp rewrite:
    #   tanh(softplus(z)) = (e^{2z} + 2 e^z) / (e^{2z} + 2 e^z + 2)
    # -> one EUP exp + one approx EUP reciprocal per element instead of
    # exp + log + tanh (3 transcendentals) on the single EUP slot.
    # On v6e/v7x the exp is done in bf16 (packed (16,128) vregs, ~2x EUP
    # throughput); the rest of the math stays f32 (required on v5e anyway).
    e = jnp.exp(z.astype(transcendental_dtype)).astype(jnp.float32)
    num = e * (e + 2.0)
    mish = z * num * pl.reciprocal(num + 2.0, approx=True)
    # For large z the exact value is ~z; the guard also keeps exp-overflow NaNs
    # confined to the garbage padded lanes of a partial tail tile.
    return jnp.where(z > 20.0, z, mish)


def _make_dense_net_kernel(n_layers, mish_dtype):
    """(n_layers - 1) x [Linear -> Mish] then a 1-wide Linear (with the
    denormalize folded into its constants), in transposed layout."""

    def kernel(x_ref, *refs):
        o_ref = refs[-1]                           # (1, block_b) f32
        # x tile arrives untransposed (block_b, d_in); cast once, the first
        # matmul contracts the shared last dim (implicit transpose on the MXU).
        xb = x_ref[...].astype(jnp.bfloat16)
        h = None
        for l in range(n_layers - 1):
            w_ref = refs[2 * l]                    # (H_out, H_in) bf16 (MXU LHS)
            b_ref = refs[2 * l + 1]                # (H_out, 1)    f32
            if l == 0:
                z = jax.lax.dot_general(           # (H_out, block_b)
                    w_ref[...], xb,
                    dimension_numbers=(((1,), (1,)), ((), ())),
                    preferred_element_type=jnp.float32) + b_ref[...]
            else:
                z = jnp.dot(w_ref[...], h,
                            preferred_element_type=jnp.float32) + b_ref[...]
            # Carry activations in bf16: halves the live vreg/VMEM footprint
            # and feeds the next MXU op directly.
            h = _mish(z, mish_dtype).astype(jnp.bfloat16)
        w_ref = refs[2 * (n_layers - 1)]           # (H_last, 1) f32, pre-scaled by std
        b_ref = refs[2 * (n_layers - 1) + 1]       # (1, 1)      f32, = b*std + mean
        # out_features == 1: VPU broadcast-multiply + sublane reduction — avoids
        # an N=1 MXU matmul and keeps the store lane-dense.
        o_ref[...] = jnp.sum(h * w_ref[...], axis=0, keepdims=True) + b_ref[...]

    return kernel


@functools.partial(jax.jit, static_argnames=("block_b",))
def dense_net_forward(x, params, mean, std, *, block_b=2048):
    """x: (B, D_in) f32. params: list of (W (out, in), b (out,)) per layer
    (PyTorch nn.Linear order). Returns (B, 1) f32 (== module output, but f32)."""
    B, d_in = x.shape
    n_layers = len(params)
    assert n_layers >= 2, "expect at least one hidden layer plus the output layer"
    assert params[-1][0].shape[0] == 1, "DenseNet output layer is 1-wide"

    gen = _tpu_generation()
    mish_dtype = jnp.bfloat16 if gen >= 6 else jnp.float32   # v5e: no bf16 EUP
    two_cores = gen >= 7                                     # v7x: 2 TCs per chip

    # ---- weights / biases (constant index maps -> fetched once) -------------
    mean = jnp.asarray(mean, jnp.float32)
    std = jnp.asarray(std, jnp.float32)
    flat_args = []
    for li, (w, b) in enumerate(params):
        if li < n_layers - 1:
            w_in = w.astype(jnp.bfloat16)                    # MXU operand
            b_in = b.reshape(-1, 1).astype(jnp.float32)
        else:
            # Fold Normalizer.denormalize (y*std + mean) into the 1-wide layer:
            # one-time constant folding, removes the epilogue + SMEM operands.
            w_in = w.reshape(-1, 1).astype(jnp.float32) * std
            b_in = b.reshape(1, 1).astype(jnp.float32) * std + mean
        flat_args += [w_in, b_in]

    # ---- batch tile (lane dimension): multiple of 128 or the full batch -----
    if two_cores and B >= 256:
        # Guarantee >= 2 grid steps so dimension_semantics=("parallel",) can
        # shard the grid across both v7x TensorCores.
        half = max(128, (((B + 1) // 2) // 128) * 128)
        block_b = min(block_b, half)
    if block_b >= B:
        block_b = B
    else:
        block_b = max(128, (block_b // 128) * 128)

    h_max = max([d_in] + [w.shape[0] for w, _ in params[:-1]])
    w_bytes = sum(int(a.size) * a.dtype.itemsize for a in flat_args)

    def vmem_need(bb):
        tile_bytes = 2 * (bb * d_in * 4 + bb * 4)        # double-buffered x / out
        act_bytes = 4 * h_max * bb * 4                   # live Mish/activation temps
        return tile_bytes + 2 * w_bytes + act_bytes + (2 << 20)

    # v7x has only 64 MiB physical VMEM: prefer shrinking block_b over pushing
    # the scoped limit past ~40 MiB.
    while block_b > 256 and vmem_need(block_b) > (40 << 20):
        block_b = max(256, ((block_b // 2) // 128) * 128)

    in_specs = [pl.BlockSpec((block_b, d_in), lambda i: (i, 0))]     # x tile
    for a in flat_args:
        in_specs.append(pl.BlockSpec(a.shape, lambda i: (0, 0)))     # resident

    compiler_kwargs = dict(dimension_semantics=("parallel",))
    need = vmem_need(block_b)
    if need > (16 << 20):        # only exceed the smallest scoped default if needed
        compiler_kwargs["vmem_limit_bytes"] = int(min(need, 48 << 20))

    out_t = pl.pallas_call(
        _make_dense_net_kernel(n_layers, mish_dtype),
        out_shape=jax.ShapeDtypeStruct((1, B), jnp.float32),
        grid_spec=pl.GridSpec(
            grid=(pl.cdiv(B, block_b),),
            in_specs=in_specs,
            out_specs=pl.BlockSpec((1, block_b), lambda i: (0, i)),
        ),
        compiler_params=pltpu.CompilerParams(**compiler_kwargs),
    )(x, *flat_args)

    return out_t.reshape(B, 1)


def init_dense_net_params(key, input_size, hidden_layers, hidden_size,
                          output_size=1, size_decay=1.0):
    """Deterministic init mirroring make_dense() layer sizes. Weights are in
    PyTorch nn.Linear (out_features, in_features) order, uniform(-1/sqrt(fan_in),
    1/sqrt(fan_in))."""
    sizes = [int(round(hidden_size * size_decay ** l, 0))
             for l in range(hidden_layers)]
    sizes = [input_size] + sizes + [output_size]
    params = []
    for fan_in, fan_out in zip(sizes[:-1], sizes[1:]):
        key, kw, kb = jax.random.split(key, 3)
        bound = 1.0 / (fan_in ** 0.5)
        w = jax.random.uniform(kw, (fan_out, fan_in), jnp.float32,
                               minval=-bound, maxval=bound)
        b = jax.random.uniform(kb, (fan_out,), jnp.float32,
                               minval=-bound, maxval=bound)
        params.append((w, b))
    return params


def dense_net_reference(x, params, mean, std):
    """Pure-JAX f32 reference of the PyTorch forward (Linear -> Mish, final
    Linear, denormalize)."""
    h = x
    n = len(params)
    for i, (w, b) in enumerate(params):
        h = h @ w.T + b
        if i < n - 1:
            h = h * jnp.tanh(jax.nn.softplus(h))
    return h * std + mean


if __name__ == "__main__":
    # Small shapes consistent with DenseNet(input_size, hidden_layers=3, ...).
    batch = 512
    input_size = 32
    hidden_layers = 3
    hidden_size = 64
    mean, std = 0.5, 2.0          # exercise Normalizer.denormalize (folded)

    key = jax.random.PRNGKey(0)
    key, kx = jax.random.split(key)
    x = jax.random.normal(kx, (batch, input_size), jnp.float32)
    params = init_dense_net_params(key, input_size, hidden_layers, hidden_size)

    y = jax.block_until_ready(dense_net_forward(x, params, mean, std))
    y_ref = dense_net_reference(x, params, mean, std)
    assert y.shape == (batch, 1)
    err = float(jnp.max(jnp.abs(y - y_ref)))
    # bf16 MXU inputs / bf16-carried activations / approx reciprocal (and bf16
    # exp on v6e/v7x) vs f32 reference => looser tolerance.
    assert jnp.allclose(y, y_ref, atol=3e-2, rtol=3e-2), (
        f"mismatch: max abs err {err}")

    # Tail-block check: batch not a multiple of the 128-wide lane tile.
    b2 = 200
    x2 = jax.random.normal(jax.random.PRNGKey(1), (b2, input_size), jnp.float32)
    y2 = jax.block_until_ready(dense_net_forward(x2, params, mean, std,
                                                 block_b=128))
    y2_ref = dense_net_reference(x2, params, mean, std)
    assert y2.shape == (b2, 1)
    assert jnp.allclose(y2, y2_ref, atol=3e-2, rtol=3e-2), "tail block mismatch"

    print("KERNEL_OK")
</pallas_src>

<mosaic_0001>
module attributes {stable_mosaic.version = 11 : i64} {
  func.func @kernel(%arg0: i32, %arg1: memref<512x32xf32, #tpu.memory_space<vmem>>, %arg2: memref<64x32xbf16, #tpu.memory_space<vmem>>, %arg3: memref<64x1xf32, #tpu.memory_space<vmem>>, %arg4: memref<64x64xbf16, #tpu.memory_space<vmem>>, %arg5: memref<64x1xf32, #tpu.memory_space<vmem>>, %arg6: memref<64x64xbf16, #tpu.memory_space<vmem>>, %arg7: memref<64x1xf32, #tpu.memory_space<vmem>>, %arg8: memref<64x1xf32, #tpu.memory_space<vmem>>, %arg9: memref<1x1xf32, #tpu.memory_space<vmem>>, %arg10: memref<1x512xf32, #tpu.memory_space<vmem>>) attributes {dimension_semantics = [#tpu.dimension_semantics<parallel>], iteration_bounds = array<i64: 1>, scalar_prefetch = 0 : i64, scratch_operands = 0 : i64, tpu.core_type = #tpu.core_type<tc>, window_params = [{transform_indices = @transform_0, window_bounds = array<i64: 512, 32>}, {pipeline_mode = #tpu.pipeline_mode<synchronous>, transform_indices = @transform_1, window_bounds = array<i64: 64, 32>}, {pipeline_mode = #tpu.pipeline_mode<synchronous>, transform_indices = @transform_2, window_bounds = array<i64: 64, 1>}, {pipeline_mode = #tpu.pipeline_mode<synchronous>, transform_indices = @transform_3, window_bounds = array<i64: 64, 64>}, {pipeline_mode = #tpu.pipeline_mode<synchronous>, transform_indices = @transform_4, window_bounds = array<i64: 64, 1>}, {pipeline_mode = #tpu.pipeline_mode<synchronous>, transform_indices = @transform_5, window_bounds = array<i64: 64, 64>}, {pipeline_mode = #tpu.pipeline_mode<synchronous>, transform_indices = @transform_6, window_bounds = array<i64: 64, 1>}, {pipeline_mode = #tpu.pipeline_mode<synchronous>, transform_indices = @transform_7, window_bounds = array<i64: 64, 1>}, {pipeline_mode = #tpu.pipeline_mode<synchronous>, transform_indices = @transform_8, window_bounds = array<i64: 1, 1>}, {transform_indices = @transform_9, window_bounds = array<i64: 1, 512>}]} {
    %c0 = arith.constant 0 : index
    %c0_0 = arith.constant 0 : index
    %0 = vector.load %arg1[%c0, %c0_0] : memref<512x32xf32, #tpu.memory_space<vmem>>, vector<512x32xf32>
    %1 = arith.truncf %0 : vector<512x32xf32> to vector<512x32xbf16>
    %c0_1 = arith.constant 0 : index
    %c0_2 = arith.constant 0 : index
    %2 = vector.load %arg2[%c0_1, %c0_2] : memref<64x32xbf16, #tpu.memory_space<vmem>>, vector<64x32xbf16>
    %cst = arith.constant dense<0.000000e+00> : vector<64x512xf32>
    %3 = tpu.matmul %2, %1, %cst {dimension_numbers = #tpu.dot_dimension_numbers<[1], [1], [0], [0], [0, 0, 1, 0], [], []>} : vector<64x32xbf16>, vector<512x32xbf16>, vector<64x512xf32> -> vector<64x512xf32>
    %c0_3 = arith.constant 0 : index
    %c0_4 = arith.constant 0 : index
    %4 = vector.load %arg3[%c0_3, %c0_4] : memref<64x1xf32, #tpu.memory_space<vmem>>, vector<64x1xf32>
    %5 = vector.broadcast %4 : vector<64x1xf32> to vector<64x512xf32>
    %6 = arith.addf %3, %5 : vector<64x512xf32>
    %7 = math.exp %6 : vector<64x512xf32>
    %cst_5 = arith.constant 2.000000e+00 : f32
    %8 = vector.broadcast %cst_5 : f32 to vector<64x512xf32>
    %9 = arith.addf %7, %8 : vector<64x512xf32>
    %10 = arith.mulf %7, %9 : vector<64x512xf32>
    %11 = arith.mulf %6, %10 : vector<64x512xf32>
    %cst_6 = arith.constant 2.000000e+00 : f32
    %12 = vector.broadcast %cst_6 : f32 to vector<64x512xf32>
    %13 = arith.addf %10, %12 : vector<64x512xf32>
    %14 = tpu.reciprocal %13 {approx = true} : vector<64x512xf32> -> vector<64x512xf32>
    %15 = arith.mulf %11, %14 : vector<64x512xf32>
    %cst_7 = arith.constant 2.000000e+01 : f32
    %16 = vector.broadcast %cst_7 : f32 to vector<64x512xf32>
    %17 = arith.cmpf ogt, %6, %16 : vector<64x512xf32>
    %18 = arith.select %17, %6, %15 : vector<64x512xi1>, vector<64x512xf32>
    %19 = arith.truncf %18 : vector<64x512xf32> to vector<64x512xbf16>
    %c0_8 = arith.constant 0 : index
    %c0_9 = arith.constant 0 : index
    %20 = vector.load %arg4[%c0_8, %c0_9] : memref<64x64xbf16, #tpu.memory_space<vmem>>, vector<64x64xbf16>
    %cst_10 = arith.constant dense<0.000000e+00> : vector<64x512xf32>
    %21 = tpu.matmul %20, %19, %cst_10 {dimension_numbers = #tpu.dot_dimension_numbers<[1], [0], [0], [1], [0, 0, 1, 1], [], []>} : vector<64x64xbf16>, vector<64x512xbf16>, vector<64x512xf32> -> vector<64x512xf32>
    %c0_11 = arith.constant 0 : index
    %c0_12 = arith.constant 0 : index
    %22 = vector.load %arg5[%c0_11, %c0_12] : memref<64x1xf32, #tpu.memory_space<vmem>>, vector<64x1xf32>
    %23 = vector.broadcast %22 : vector<64x1xf32> to vector<64x512xf32>
    %24 = arith.addf %21, %23 : vector<64x512xf32>
    %25 = math.exp %24 : vector<64x512xf32>
    %cst_13 = arith.constant 2.000000e+00 : f32
    %26 = vector.broadcast %cst_13 : f32 to vector<64x512xf32>
    %27 = arith.addf %25, %26 : vector<64x512xf32>
    %28 = arith.mulf %25, %27 : vector<64x512xf32>
    %29 = arith.mulf %24, %28 : vector<64x512xf32>
    %cst_14 = arith.constant 2.000000e+00 : f32
    %30 = vector.broadcast %cst_14 : f32 to vector<64x512xf32>
    %31 = arith.addf %28, %30 : vector<64x512xf32>
    %32 = tpu.reciprocal %31 {approx = true} : vector<64x512xf32> -> vector<64x512xf32>
    %33 = arith.mulf %29, %32 : vector<64x512xf32>
    %cst_15 = arith.constant 2.000000e+01 : f32
    %34 = vector.broadcast %cst_15 : f32 to vector<64x512xf32>
    %35 = arith.cmpf ogt, %24, %34 : vector<64x512xf32>
    %36 = arith.select %35, %24, %33 : vector<64x512xi1>, vector<64x512xf32>
    %37 = arith.truncf %36 : vector<64x512xf32> to vector<64x512xbf16>
    %c0_16 = arith.constant 0 : index
    %c0_17 = arith.constant 0 : index
    %38 = vector.load %arg6[%c0_16, %c0_17] : memref<64x64xbf16, #tpu.memory_space<vmem>>, vector<64x64xbf16>
    %cst_18 = arith.constant dense<0.000000e+00> : vector<64x512xf32>
    %39 = tpu.matmul %38, %37, %cst_18 {dimension_numbers = #tpu.dot_dimension_numbers<[1], [0], [0], [1], [0, 0, 1, 1], [], []>} : vector<64x64xbf16>, vector<64x512xbf16>, vector<64x512xf32> -> vector<64x512xf32>
    %c0_19 = arith.constant 0 : index
    %c0_20 = arith.constant 0 : index
    %40 = vector.load %arg7[%c0_19, %c0_20] : memref<64x1xf32, #tpu.memory_space<vmem>>, vector<64x1xf32>
    %41 = vector.broadcast %40 : vector<64x1xf32> to vector<64x512xf32>
    %42 = arith.addf %39, %41 : vector<64x512xf32>
    %43 = math.exp %42 : vector<64x512xf32>
    %cst_21 = arith.constant 2.000000e+00 : f32
    %44 = vector.broadcast %cst_21 : f32 to vector<64x512xf32>
    %45 = arith.addf %43, %44 : vector<64x512xf32>
    %46 = arith.mulf %43, %45 : vector<64x512xf32>
    %47 = arith.mulf %42, %46 : vector<64x512xf32>
    %cst_22 = arith.constant 2.000000e+00 : f32
    %48 = vector.broadcast %cst_22 : f32 to vector<64x512xf32>
    %49 = arith.addf %46, %48 : vector<64x512xf32>
    %50 = tpu.reciprocal %49 {approx = true} : vector<64x512xf32> -> vector<64x512xf32>
    %51 = arith.mulf %47, %50 : vector<64x512xf32>
    %cst_23 = arith.constant 2.000000e+01 : f32
    %52 = vector.broadcast %cst_23 : f32 to vector<64x512xf32>
    %53 = arith.cmpf ogt, %42, %52 : vector<64x512xf32>
    %54 = arith.select %53, %42, %51 : vector<64x512xi1>, vector<64x512xf32>
    %55 = arith.truncf %54 : vector<64x512xf32> to vector<64x512xbf16>
    %c0_24 = arith.constant 0 : index
    %c0_25 = arith.constant 0 : index
    %56 = vector.load %arg8[%c0_24, %c0_25] : memref<64x1xf32, #tpu.memory_space<vmem>>, vector<64x1xf32>
    %57 = arith.extf %55 : vector<64x512xbf16> to vector<64x512xf32>
    %58 = vector.broadcast %56 : vector<64x1xf32> to vector<64x512xf32>
    %59 = arith.mulf %57, %58 : vector<64x512xf32>
    %cst_26 = arith.constant dense<0.000000e+00> : vector<512xf32>
    %60 = vector.multi_reduction <add>, %59, %cst_26 [0] : vector<64x512xf32> to vector<512xf32>
    %61 = vector.shape_cast %60 : vector<512xf32> to vector<1x512xf32>
    %c0_27 = arith.constant 0 : index
    %c0_28 = arith.constant 0 : index
    %62 = vector.load %arg9[%c0_27, %c0_28] : memref<1x1xf32, #tpu.memory_space<vmem>>, vector<1x1xf32>
    %63 = vector.broadcast %62 : vector<1x1xf32> to vector<1x512xf32>
    %64 = arith.addf %61, %63 : vector<1x512xf32>
    %c0_29 = arith.constant 0 : index
    %c0_30 = arith.constant 0 : index
    %65 = vector.load %arg10[%c0_29, %c0_30] : memref<1x512xf32, #tpu.memory_space<vmem>>, vector<1x512xf32>
    tpu.vector_store %arg10[%c0_29, %c0_30], %64 {strides = array<i32>} : memref<1x512xf32, #tpu.memory_space<vmem>>, vector<1x512xf32>,
    return
  }
  func.func @transform_0(%arg0: i32) -> (i32, i32) {
    %c0_i32 = arith.constant 0 : i32
    %c0_i32_0 = arith.constant 0 : i32
    return %arg0, %c0_i32 : i32, i32
  }
  func.func @transform_1(%arg0: i32) -> (i32, i32) {
    %c0_i32 = arith.constant 0 : i32
    %c0_i32_0 = arith.constant 0 : i32
    %c0_i32_1 = arith.constant 0 : i32
    return %c0_i32, %c0_i32_0 : i32, i32
  }
  func.func @transform_2(%arg0: i32) -> (i32, i32) {
    %c0_i32 = arith.constant 0 : i32
    %c0_i32_0 = arith.constant 0 : i32
    %c0_i32_1 = arith.constant 0 : i32
    return %c0_i32, %c0_i32_0 : i32, i32
  }
  func.func @transform_3(%arg0: i32) -> (i32, i32) {
    %c0_i32 = arith.constant 0 : i32
    %c0_i32_0 = arith.constant 0 : i32
    %c0_i32_1 = arith.constant 0 : i32
    return %c0_i32, %c0_i32_0 : i32, i32
  }
  func.func @transform_4(%arg0: i32) -> (i32, i32) {
    %c0_i32 = arith.constant 0 : i32
    %c0_i32_0 = arith.constant 0 : i32
    %c0_i32_1 = arith.constant 0 : i32
    return %c0_i32, %c0_i32_0 : i32, i32
  }
  func.func @transform_5(%arg0: i32) -> (i32, i32) {
    %c0_i32 = arith.constant 0 : i32
    %c0_i32_0 = arith.constant 0 : i32
    %c0_i32_1 = arith.constant 0 : i32
    return %c0_i32, %c0_i32_0 : i32, i32
  }
  func.func @transform_6(%arg0: i32) -> (i32, i32) {
    %c0_i32 = arith.constant 0 : i32
    %c0_i32_0 = arith.constant 0 : i32
    %c0_i32_1 = arith.constant 0 : i32
    return %c0_i32, %c0_i32_0 : i32, i32
  }
  func.func @transform_7(%arg0: i32) -> (i32, i32) {
    %c0_i32 = arith.constant 0 : i32
    %c0_i32_0 = arith.constant 0 : i32
    %c0_i32_1 = arith.constant 0 : i32
    return %c0_i32, %c0_i32_0 : i32, i32
  }
  func.func @transform_8(%arg0: i32) -> (i32, i32) {
    %c0_i32 = arith.constant 0 : i32
    %c0_i32_0 = arith.constant 0 : i32
    %c0_i32_1 = arith.constant 0 : i32
    return %c0_i32, %c0_i32_0 : i32, i32
  }
  func.func @transform_9(%arg0: i32) -> (i32, i32) {
    %c0_i32 = arith.constant 0 : i32
    %c0_i32_0 = arith.constant 0 : i32
    return %c0_i32, %arg0 : i32, i32
  }
}

</mosaic_0001>

<llo_original>
// kernel: dense_net_forward.1
$region0: #{dense_net_forward.1}
  #allocation0 [shape = 'u32[]', space=smem, size = 0x4, offset = 0x4, fixed_abs, tag = 'smem constant byte address 0x4 - core index']
  #allocation1 [shape = 'u32[144,128]{1,0:T(1,128)}', space=vmem, size = 0x12000, scoped, tag = 'internal scratch']
  #allocation2 [shape = 'f32[1,1]{1,0:T(1,128)S(1)}', space=vmem, size = 0x200, scoped, tag = 'scoped memory for dense_net_forward.1']
  %s0 = inlined_call_operand.vmem [shape: f32[512,32], index: 0, kind: input, shape index: {}]
  %s1 = inlined_call_operand.vmem [shape: bf16[64,32], index: 1, kind: input, shape index: {}]
  %s2 = inlined_call_operand.vmem [shape: f32[64,1], index: 2, kind: input, shape index: {}]
  %s3 = inlined_call_operand.vmem [shape: bf16[64,64], index: 3, kind: input, shape index: {}]
  %s4 = inlined_call_operand.vmem [shape: f32[64,1], index: 4, kind: input, shape index: {}]
  %s5 = inlined_call_operand.vmem [shape: bf16[64,64], index: 5, kind: input, shape index: {}]
  %s6 = inlined_call_operand.vmem [shape: f32[64,1], index: 6, kind: input, shape index: {}]
  %s7 = inlined_call_operand.vmem [shape: f32[64,1], index: 7, kind: input, shape index: {}]
  %s8 = inlined_call_operand.<no memory space> [shape: f32[1,1], index: 8, kind: input, shape index: {}]
  %s9 = inlined_call_operand.hbm [shape: f32[1,512], index: 9, kind: output, shape index: {}]
  %s10 = sld [smem:[#allocation0]]
  $region46: #{dense_net_forward.1} parent=0
    _
  %s12 = ssub.s32 1, %s10
  %s13 = scalar_select 0, %s12, %s10
  %v14 = vstv %s8
  %15 = vst [vmem:[#allocation2] sm:$0x1] %v14
  $region1: #{dense_net_forward.1} parent=0
    #allocation3 [shape = 'u8[2048]{0}', space=vmem, size = 0x800, scoped, tag = 'output window, operand 0, single buffered']
    #allocation4 [shape = 's32[1]{0}', space=sflag, size = 0x4, scoped, tag = 'scoped memory for dense_net_forward.1']
    %16 = vsyncpa [#allocation4], 0
    // Predicated region
    $region2: #{dense_net_forward.1} parent=1 // pred_check
      _
    $region3: #{dense_net_forward.1} parent=1 // pred_check_branch
      %18 = sbr.rel (0) target = $region5
    $region4: #{dense_net_forward.1} parent=1 // pred_region
      _
    $region5: #{dense_net_forward.1} parent=1 // pred_fallthru
      _
    // Predicated region
    $region6: #{dense_net_forward.1} parent=1 // pred_check
      _
    $region7: #{dense_net_forward.1} parent=1 // pred_check_branch
      %20 = sbr.rel (0) target = $region9
    $region8: #{dense_net_forward.1} parent=1 // pred_region
      _
    $region9: #{dense_net_forward.1} parent=1 // pred_fallthru
      _
    // Predicated region
    $region10: #{dense_net_forward.1} parent=1 // pred_check
      _
    $region11: #{dense_net_forward.1} parent=1 // pred_check_branch
      %22 = sbr.rel (0) target = $region13
    $region12: #{dense_net_forward.1} parent=1 // pred_region
      _
    $region13: #{dense_net_forward.1} parent=1 // pred_fallthru
      _
    // Predicated region
    $region14: #{dense_net_forward.1} parent=1 // pred_check
      _
    $region15: #{dense_net_forward.1} parent=1 // pred_check_branch
      %24 = sbr.rel (0) target = $region17
    $region16: #{dense_net_forward.1} parent=1 // pred_region
      _
    $region17: #{dense_net_forward.1} parent=1 // pred_fallthru
      _
    // Predicated region
    $region18: #{dense_net_forward.1} parent=1 // pred_check
      _
    $region19: #{dense_net_forward.1} parent=1 // pred_check_branch
      %26 = sbr.rel (0) target = $region21
    $region20: #{dense_net_forward.1} parent=1 // pred_region
      _
    $region21: #{dense_net_forward.1} parent=1 // pred_fallthru
      _
    // Predicated region
    $region22: #{dense_net_forward.1} parent=1 // pred_check
      _
    $region23: #{dense_net_forward.1} parent=1 // pred_check_branch
      %28 = sbr.rel (0) target = $region25
    $region24: #{dense_net_forward.1} parent=1 // pred_region
      _
    $region25: #{dense_net_forward.1} parent=1 // pred_fallthru
      _
    // Predicated region
    $region26: #{dense_net_forward.1} parent=1 // pred_check
      _
    $region27: #{dense_net_forward.1} parent=1 // pred_check_branch
      %30 = sbr.rel (0) target = $region29
    $region28: #{dense_net_forward.1} parent=1 // pred_region
      _
    $region29: #{dense_net_forward.1} parent=1 // pred_fallthru
      _
    // Predicated region
    $region30: #{dense_net_forward.1} parent=1 // pred_check
      _
    $region31: #{dense_net_forward.1} parent=1 // pred_check_branch
      %32 = sbr.rel (0) target = $region33
    $region32: #{dense_net_forward.1} parent=1 // pred_region
      _
    $region33: #{dense_net_forward.1} parent=1 // pred_fallthru
      _
    // Predicated region
    $region34: #{dense_net_forward.1} parent=1 // pred_check
      _
    $region35: #{dense_net_forward.1} parent=1 // pred_check_branch
      %34 = sbr.rel (0) target = $region37
    $region36: #{dense_net_forward.1} parent=1 // pred_region
      _
    $region37: #{dense_net_forward.1} parent=1 // pred_fallthru
      _
    %v36 = vld [vmem:[%s0] sm:$0xff]
    %v37 = vld [vmem:[%s0 + $0x8] sm:$0xff]
    %v38 = vld [vmem:[%s0 + $0x10] sm:$0xff]
    %v39 = vld [vmem:[%s0 + $0x18] sm:$0xff]
    %v40 = vld [vmem:[%s0 + $0x20] sm:$0xff]
    %v41 = vld [vmem:[%s0 + $0x28] sm:$0xff]
    %v42 = vld [vmem:[%s0 + $0x30] sm:$0xff]
    %v43 = vld [vmem:[%s0 + $0x38] sm:$0xff]
    %v44 = vld [vmem:[%s0 + $0x40] sm:$0xff]
    %v45 = vld [vmem:[%s0 + $0x48] sm:$0xff]
    %v46 = vld [vmem:[%s0 + $0x50] sm:$0xff]
    %v47 = vld [vmem:[%s0 + $0x58] sm:$0xff]
    %v48 = vld [vmem:[%s0 + $0x60] sm:$0xff]
    %v49 = vld [vmem:[%s0 + $0x68] sm:$0xff]
    %v50 = vld [vmem:[%s0 + $0x70] sm:$0xff]
    %v51 = vld [vmem:[%s0 + $0x78] sm:$0xff]
    %v52 = vld [vmem:[%s0 + $0x80] sm:$0xff]
    %v53 = vld [vmem:[%s0 + $0x88] sm:$0xff]
    %v54 = vld [vmem:[%s0 + $0x90] sm:$0xff]
    %v55 = vld [vmem:[%s0 + $0x98] sm:$0xff]
    %v56 = vld [vmem:[%s0 + $0xa0] sm:$0xff]
    %v57 = vld [vmem:[%s0 + $0xa8] sm:$0xff]
    %v58 = vld [vmem:[%s0 + $0xb0] sm:$0xff]
    %v59 = vld [vmem:[%s0 + $0xb8] sm:$0xff]
    %v60 = vld [vmem:[%s0 + $0xc0] sm:$0xff]
    %v61 = vld [vmem:[%s0 + $0xc8] sm:$0xff]
    %v62 = vld [vmem:[%s0 + $0xd0] sm:$0xff]
    %v63 = vld [vmem:[%s0 + $0xd8] sm:$0xff]
    %v64 = vld [vmem:[%s0 + $0xe0] sm:$0xff]
    %v65 = vld [vmem:[%s0 + $0xe8] sm:$0xff]
    %v66 = vld [vmem:[%s0 + $0xf0] sm:$0xff]
    %v67 = vld [vmem:[%s0 + $0xf8] sm:$0xff]
    %v68 = vld [vmem:[%s0 + $0x100] sm:$0xff]
    %v69 = vld [vmem:[%s0 + $0x108] sm:$0xff]
    %v70 = vld [vmem:[%s0 + $0x110] sm:$0xff]
    %v71 = vld [vmem:[%s0 + $0x118] sm:$0xff]
    %v72 = vld [vmem:[%s0 + $0x120] sm:$0xff]
    %v73 = vld [vmem:[%s0 + $0x128] sm:$0xff]
    %v74 = vld [vmem:[%s0 + $0x130] sm:$0xff]
    %v75 = vld [vmem:[%s0 + $0x138] sm:$0xff]
    %v76 = vld [vmem:[%s0 + $0x140] sm:$0xff]
    %v77 = vld [vmem:[%s0 + $0x148] sm:$0xff]
    %v78 = vld [vmem:[%s0 + $0x150] sm:$0xff]
    %v79 = vld [vmem:[%s0 + $0x158] sm:$0xff]
    %v80 = vld [vmem:[%s0 + $0x160] sm:$0xff]
    %v81 = vld [vmem:[%s0 + $0x168] sm:$0xff]
    %v82 = vld [vmem:[%s0 + $0x170] sm:$0xff]
    %v83 = vld [vmem:[%s0 + $0x178] sm:$0xff]
    %v84 = vld [vmem:[%s0 + $0x180] sm:$0xff]
    %v85 = vld [vmem:[%s0 + $0x188] sm:$0xff]
    %v86 = vld [vmem:[%s0 + $0x190] sm:$0xff]
    %v87 = vld [vmem:[%s0 + $0x198] sm:$0xff]
    %v88 = vld [vmem:[%s0 + $0x1a0] sm:$0xff]
    %v89 = vld [vmem:[%s0 + $0x1a8] sm:$0xff]
    %v90 = vld [vmem:[%s0 + $0x1b0] sm:$0xff]
    %v91 = vld [vmem:[%s0 + $0x1b8] sm:$0xff]
    %v92 = vld [vmem:[%s0 + $0x1c0] sm:$0xff]
    %v93 = vld [vmem:[%s0 + $0x1c8] sm:$0xff]
    %v94 = vld [vmem:[%s0 + $0x1d0] sm:$0xff]
    %v95 = vld [vmem:[%s0 + $0x1d8] sm:$0xff]
    %v96 = vld [vmem:[%s0 + $0x1e0] sm:$0xff]
    %v97 = vld [vmem:[%s0 + $0x1e8] sm:$0xff]
    %v98 = vld [vmem:[%s0 + $0x1f0] sm:$0xff]
    %v99 = vld [vmem:[%s0 + $0x1f8] sm:$0xff]
    %v100 = vpack.c.bf16 %v37, %v36
    %v101 = vpack.c.bf16 %v39, %v38
    %v102 = vpack.c.bf16 %v41, %v40
    %v103 = vpack.c.bf16 %v43, %v42
    %v104 = vpack.c.bf16 %v45, %v44
    %v105 = vpack.c.bf16 %v47, %v46
    %v106 = vpack.c.bf16 %v49, %v48
    %v107 = vpack.c.bf16 %v51, %v50
    %v108 = vpack.c.bf16 %v53, %v52
    %v109 = vpack.c.bf16 %v55, %v54
    %v110 = vpack.c.bf16 %v57, %v56
    %v111 = vpack.c.bf16 %v59, %v58
    %v112 = vpack.c.bf16 %v61, %v60
    %v113 = vpack.c.bf16 %v63, %v62
    %v114 = vpack.c.bf16 %v65, %v64
    %v115 = vpack.c.bf16 %v67, %v66
    %v116 = vpack.c.bf16 %v69, %v68
    %v117 = vpack.c.bf16 %v71, %v70
    %v118 = vpack.c.bf16 %v73, %v72
    %v119 = vpack.c.bf16 %v75, %v74
    %v120 = vpack.c.bf16 %v77, %v76
    %v121 = vpack.c.bf16 %v79, %v78
    %v122 = vpack.c.bf16 %v81, %v80
    %v123 = vpack.c.bf16 %v83, %v82
    %v124 = vpack.c.bf16 %v85, %v84
    %v125 = vpack.c.bf16 %v87, %v86
    %v126 = vpack.c.bf16 %v89, %v88
    %v127 = vpack.c.bf16 %v91, %v90
    %v128 = vpack.c.bf16 %v93, %v92
    %v129 = vpack.c.bf16 %v95, %v94
    %v130 = vpack.c.bf16 %v97, %v96
    %v131 = vpack.c.bf16 %v99, %v98
    %v132 = vld [vmem:[%s1] sm:$0xf]
    %v133 = vld [vmem:[%s1 + $0x4] sm:$0xf]
    %v134 = vld [vmem:[%s1 + $0x8] sm:$0xf]
    %v135 = vld [vmem:[%s1 + $0xc] sm:$0xf]
    %v136 = vld [vmem:[%s1 + $0x10] sm:$0xf]
    %v137 = vld [vmem:[%s1 + $0x14] sm:$0xf]
    %v138 = vld [vmem:[%s1 + $0x18] sm:$0xf]
    %v139 = vld [vmem:[%s1 + $0x1c] sm:$0xf]
    %v140 = vld [vmem:[%s2] sm:$0xff]
    %v141 = vld [vmem:[%s2 + $0x8] sm:$0xff]
    %v142 = vld [vmem:[%s2 + $0x10] sm:$0xff]
    %v143 = vld [vmem:[%s2 + $0x18] sm:$0xff]
    %v144 = vld [vmem:[%s2 + $0x20] sm:$0xff]
    %v145 = vld [vmem:[%s2 + $0x28] sm:$0xff]
    %v146 = vld [vmem:[%s2 + $0x30] sm:$0xff]
    %v147 = vld [vmem:[%s2 + $0x38] sm:$0xff]
    %149 = vset.pattern.permute.xlu0 0
    %150 = vperm.xlu0 %149, %v140
    %v151 = vpop.permute.xlu0 %150
    %154 = vset.pattern.permute.xlu0 0
    %155 = vperm.xlu0 %154, %v141
    %v156 = vpop.permute.xlu0 %155
    %159 = vset.pattern.permute.xlu0 0
    %160 = vperm.xlu0 %159, %v142
    %v161 = vpop.permute.xlu0 %160
    %164 = vset.pattern.permute.xlu0 0
    %165 = vperm.xlu0 %164, %v143
    %v166 = vpop.permute.xlu0 %165
    %169 = vset.pattern.permute.xlu0 0
    %170 = vperm.xlu0 %169, %v144
    %v171 = vpop.permute.xlu0 %170
    %174 = vset.pattern.permute.xlu0 0
    %175 = vperm.xlu0 %174, %v145
    %v176 = vpop.permute.xlu0 %175
    %179 = vset.pattern.permute.xlu0 0
    %180 = vperm.xlu0 %179, %v146
    %v181 = vpop.permute.xlu0 %180
    %184 = vset.pattern.permute.xlu0 0
    %185 = vperm.xlu0 %184, %v147
    %v186 = vpop.permute.xlu0 %185
    %v196 = vunpack.c.l.b16 %v132
    %v197 = vunpack.c.l.b16 %v133
    %v198 = vunpack.c.l.b16 %v134
    %v199 = vunpack.c.l.b16 %v135
    %v200 = vunpack.c.l.b16 %v136
    %v201 = vunpack.c.l.b16 %v137
    %v202 = vunpack.c.l.b16 %v138
    %v203 = vunpack.c.l.b16 %v139
    %v204 = vpack.c.b16 %v197, %v196
    %v205 = vpack.c.b16 %v199, %v198
    %v206 = vpack.c.b16 %v201, %v200
    %v207 = vpack.c.b16 %v203, %v202
    %vm208 = vcmask 261120
    %v210 = vsel %vm208, %v204, 0
    %v213 = vsel %vm208, %v205, 0
    %v216 = vsel %vm208, %v206, 0
    %v219 = vsel %vm208, %v207, 0
    %v222 = vsel %vm208, %v100, 0
    %v225 = vsel %vm208, %v101, 0
    %v228 = vsel %vm208, %v102, 0
    %v231 = vsel %vm208, %v103, 0
    %v234 = vsel %vm208, %v104, 0
    %v237 = vsel %vm208, %v105, 0
    %v240 = vsel %vm208, %v106, 0
    %v243 = vsel %vm208, %v107, 0
    %v246 = vsel %vm208, %v108, 0
    %v249 = vsel %vm208, %v109, 0
    %v252 = vsel %vm208, %v110, 0
    %v255 = vsel %vm208, %v111, 0
    %v258 = vsel %vm208, %v112, 0
    %v261 = vsel %vm208, %v113, 0
    %v264 = vsel %vm208, %v114, 0
    %v267 = vsel %vm208, %v115, 0
    %v270 = vsel %vm208, %v116, 0
    %v273 = vsel %vm208, %v117, 0
    %v276 = vsel %vm208, %v118, 0
    %v279 = vsel %vm208, %v119, 0
    %v282 = vsel %vm208, %v120, 0
    %v285 = vsel %vm208, %v121, 0
    %v288 = vsel %vm208, %v122, 0
    %v291 = vsel %vm208, %v123, 0
    %v294 = vsel %vm208, %v124, 0
    %v297 = vsel %vm208, %v125, 0
    %v300 = vsel %vm208, %v126, 0
    %v303 = vsel %vm208, %v127, 0
    %v306 = vsel %vm208, %v128, 0
    %v309 = vsel %vm208, %v129, 0
    %v312 = vsel %vm208, %v130, 0
    %v315 = vsel %vm208, %v131, 0
    %317 = vmatprep.subr.bf16.mxu0 0
    %318 = vmatpush1.bf16.xpose.msra.mxu0 %v243
    %319 = vmatprep.subr.bf16.mxu0 0
    %320 = vmatpush1.bf16.xpose.msra.mxu0 %v240
    %321 = vmatprep.subr.bf16.mxu0 0
    %322 = vmatpush1.bf16.xpose.msra.mxu0 %v237
    %323 = vmatprep.subr.bf16.mxu0 0
    %324 = vmatpush1.bf16.xpose.msra.mxu0 %v234
    %325 = vmatprep.subr.bf16.mxu0 0
    %326 = vmatpush1.bf16.xpose.msra.mxu0 %v231
    %327 = vmatprep.subr.bf16.mxu0 0
    %328 = vmatpush1.bf16.xpose.msra.mxu0 %v228
    %329 = vmatprep.subr.bf16.mxu0 0
    %330 = vmatpush1.bf16.xpose.msra.mxu0 %v225
    %331 = vmatprep.subr.bf16.mxu0 0
    %332 = vmatpush1.bf16.xpose.msra.mxu0 %v222
    %333 = vmatprep.subr.bf16.mxu0 0
    %334 = vmatpush2.bf16.xpose.msra.mxu0 %v267
    %335 = vmatprep.subr.bf16.mxu0 0
    %336 = vmatpush2.bf16.xpose.msra.mxu0 %v264
    %337 = vmatprep.subr.bf16.mxu0 0
    %338 = vmatpush2.bf16.xpose.msra.mxu0 %v261
    %339 = vmatprep.subr.bf16.mxu0 0
    %340 = vmatpush2.bf16.xpose.msra.mxu0 %v258
    %341 = vmatprep.subr.bf16.mxu0 0
    %342 = vmatpush2.bf16.xpose.msra.mxu0 %v255
    %343 = vmatprep.subr.bf16.mxu0 0
    %344 = vmatpush2.bf16.xpose.msra.mxu0 %v252
    %345 = vmatprep.subr.bf16.mxu0 0
    %346 = vmatpush2.bf16.xpose.msra.mxu0 %v249
    %347 = vmatprep.subr.bf16.mxu0 0
    %348 = vmatpush2.bf16.xpose.msra.mxu0 %v246
    %349 = vmatprep.mubr.bf16.mxu0 0
    %350 = vmatmul.mubr.bf16.gmra.mxu0 %v210
    %v351 = vpop.f32.mrf.mxu0
    %v352 = vadd.f32 %v151, %v351
    %v353 = vpop.f32.mrf.mxu0
    %v354 = vadd.f32 %v151, %v353
    %v355 = vpop.f32.mrf.mxu0
    %v356 = vadd.f32 %v156, %v355
    %v357 = vpop.f32.mrf.mxu0
    %v358 = vadd.f32 %v156, %v357
    %359 = vmatprep.mubr.bf16.mxu0 0
    %360 = vmatmul.mubr.bf16.gmra.mxu0 %v213
    %v361 = vpop.f32.mrf.mxu0
    %v362 = vadd.f32 %v161, %v361
    %v363 = vpop.f32.mrf.mxu0
    %v364 = vadd.f32 %v161, %v363
    %v365 = vpop.f32.mrf.mxu0
    %v366 = vadd.f32 %v166, %v365
    %v367 = vpop.f32.mrf.mxu0
    %v368 = vadd.f32 %v166, %v367
    %369 = vmatprep.mubr.bf16.mxu0 0
    %370 = vmatmul.mubr.bf16.gmra.mxu0 %v216
    %v371 = vpop.f32.mrf.mxu0
    %v372 = vadd.f32 %v171, %v371
    %v373 = vpop.f32.mrf.mxu0
    %v374 = vadd.f32 %v171, %v373
    %v375 = vpop.f32.mrf.mxu0
    %v376 = vadd.f32 %v176, %v375
    %v377 = vpop.f32.mrf.mxu0
    %v378 = vadd.f32 %v176, %v377
    %379 = vmatprep.mubr.bf16.mxu0 0
    %380 = vmatmul.mubr.bf16.gmra.mxu0 %v219
    %v381 = vpop.f32.mrf.mxu0
    %v382 = vadd.f32 %v181, %v381
    %v383 = vpop.f32.mrf.mxu0
    %v384 = vadd.f32 %v181, %v383
    %v385 = vpop.f32.mrf.mxu0
    %v386 = vadd.f32 %v186, %v385
    %v387 = vpop.f32.mrf.mxu0
    %v388 = vadd.f32 %v186, %v387
    %389 = vdwg.mxu0
    %390 = vmatprep.subr.bf16.mxu0 0
    %391 = vmatpush1.bf16.xpose.msra.mxu0 %v291
    %392 = vmatprep.subr.bf16.mxu0 0
    %393 = vmatpush1.bf16.xpose.msra.mxu0 %v288
    %394 = vmatprep.subr.bf16.mxu0 0
    %395 = vmatpush1.bf16.xpose.msra.mxu0 %v285
    %396 = vmatprep.subr.bf16.mxu0 0
    %397 = vmatpush1.bf16.xpose.msra.mxu0 %v282
    %398 = vmatprep.subr.bf16.mxu0 0
    %399 = vmatpush1.bf16.xpose.msra.mxu0 %v279
    %400 = vmatprep.subr.bf16.mxu0 0
    %401 = vmatpush1.bf16.xpose.msra.mxu0 %v276
    %402 = vmatprep.subr.bf16.mxu0 0
    %403 = vmatpush1.bf16.xpose.msra.mxu0 %v273
    %404 = vmatprep.subr.bf16.mxu0 0
    %405 = vmatpush1.bf16.xpose.msra.mxu0 %v270
    %406 = vmatprep.subr.bf16.mxu0 0
    %407 = vmatpush2.bf16.xpose.msra.mxu0 %v315
    %408 = vmatprep.subr.bf16.mxu0 0
    %409 = vmatpush2.bf16.xpose.msra.mxu0 %v312
    %410 = vmatprep.subr.bf16.mxu0 0
    %411 = vmatpush2.bf16.xpose.msra.mxu0 %v309
    %412 = vmatprep.subr.bf16.mxu0 0
    %413 = vmatpush2.bf16.xpose.msra.mxu0 %v306
    %414 = vmatprep.subr.bf16.mxu0 0
    %415 = vmatpush2.bf16.xpose.msra.mxu0 %v303
    %416 = vmatprep.subr.bf16.mxu0 0
    %417 = vmatpush2.bf16.xpose.msra.mxu0 %v300
    %418 = vmatprep.subr.bf16.mxu0 0
    %419 = vmatpush2.bf16.xpose.msra.mxu0 %v297
    %420 = vmatprep.subr.bf16.mxu0 0
    %421 = vmatpush2.bf16.xpose.msra.mxu0 %v294
    %422 = vmatprep.mubr.bf16.mxu0 0
    %423 = vmatmul.mubr.bf16.gmra.mxu0 %v210
    %v424 = vpop.f32.mrf.mxu0
    %v425 = vadd.f32 %v151, %v424
    %v426 = vpop.f32.mrf.mxu0
    %v427 = vadd.f32 %v151, %v426
    %v428 = vpop.f32.mrf.mxu0
    %v429 = vadd.f32 %v156, %v428
    %v430 = vpop.f32.mrf.mxu0
    %v431 = vadd.f32 %v156, %v430
    %432 = vmatprep.mubr.bf16.mxu0 0
    %433 = vmatmul.mubr.bf16.gmra.mxu0 %v213
    %v434 = vpop.f32.mrf.mxu0
    %v435 = vadd.f32 %v161, %v434
    %v436 = vpop.f32.mrf.mxu0
    %v437 = vadd.f32 %v161, %v436
    %v438 = vpop.f32.mrf.mxu0
    %v439 = vadd.f32 %v166, %v438
    %v440 = vpop.f32.mrf.mxu0
    %v441 = vadd.f32 %v166, %v440
    %442 = vmatprep.mubr.bf16.mxu0 0
    %443 = vmatmul.mubr.bf16.gmra.mxu0 %v216
    %v444 = vpop.f32.mrf.mxu0
    %v445 = vadd.f32 %v171, %v444
    %v446 = vpop.f32.mrf.mxu0
    %v447 = vadd.f32 %v171, %v446
    %v448 = vpop.f32.mrf.mxu0
    %v449 = vadd.f32 %v176, %v448
    %v450 = vpop.f32.mrf.mxu0
    %v451 = vadd.f32 %v176, %v450
    %452 = vmatprep.mubr.bf16.mxu0 0
    %453 = vmatmul.mubr.bf16.gmra.mxu0 %v219
    %v454 = vpop.f32.mrf.mxu0
    %v455 = vadd.f32 %v181, %v454
    %v456 = vpop.f32.mrf.mxu0
    %v457 = vadd.f32 %v181, %v456
    %v458 = vpop.f32.mrf.mxu0
    %v459 = vadd.f32 %v186, %v458
    %v460 = vpop.f32.mrf.mxu0
    %v461 = vadd.f32 %v186, %v460
    %462 = vdwg.mxu0
    %v463 = vmul.f32 %v352, 1.442695
    %v464 = vpow.pop %v463
    %v465 = vmul.f32 %v354, 1.442695
    %v466 = vpow.pop %v465
    %v467 = vmul.f32 %v425, 1.442695
    %v468 = vpow.pop %v467
    %v469 = vmul.f32 %v427, 1.442695
    %v470 = vpow.pop %v469
    %v471 = vmul.f32 %v356, 1.442695
    %v472 = vpow.pop %v471
    %v473 = vmul.f32 %v358, 1.442695
    %v474 = vpow.pop %v473
    %v475 = vmul.f32 %v429, 1.442695
    %v476 = vpow.pop %v475
    %v477 = vmul.f32 %v431, 1.442695
    %v478 = vpow.pop %v477
    %v479 = vmul.f32 %v362, 1.442695
    %v480 = vpow.pop %v479
    %v481 = vmul.f32 %v364, 1.442695
    %v482 = vpow.pop %v481
    %v483 = vmul.f32 %v435, 1.442695
    %v484 = vpow.pop %v483
    %v485 = vmul.f32 %v437, 1.442695
    %v486 = vpow.pop %v485
    %v487 = vmul.f32 %v366, 1.442695
    %v488 = vpow.pop %v487
    %v489 = vmul.f32 %v368, 1.442695
    %v490 = vpow.pop %v489
    %v491 = vmul.f32 %v439, 1.442695
    %v492 = vpow.pop %v491
    %v493 = vmul.f32 %v441, 1.442695
    %v494 = vpow.pop %v493
    %v495 = vmul.f32 %v372, 1.442695
    %v496 = vpow.pop %v495
    %v497 = vmul.f32 %v374, 1.442695
    %v498 = vpow.pop %v497
    %v499 = vmul.f32 %v445, 1.442695
    %v500 = vpow.pop %v499
    %v501 = vmul.f32 %v447, 1.442695
    %v502 = vpow.pop %v501
    %v503 = vmul.f32 %v376, 1.442695
    %v504 = vpow.pop %v503
    %v505 = vmul.f32 %v378, 1.442695
    %v506 = vpow.pop %v505
    %v507 = vmul.f32 %v449, 1.442695
    %v508 = vpow.pop %v507
    %v509 = vmul.f32 %v451, 1.442695
    %v510 = vpow.pop %v509
    %v511 = vmul.f32 %v382, 1.442695
    %v512 = vpow.pop %v511
    %v513 = vmul.f32 %v384, 1.442695
    %v514 = vpow.pop %v513
    %v515 = vmul.f32 %v455, 1.442695
    %v516 = vpow.pop %v515
    %v517 = vmul.f32 %v457, 1.442695
    %v518 = vpow.pop %v517
    %v519 = vmul.f32 %v386, 1.442695
    %v520 = vpow.pop %v519
    %v521 = vmul.f32 %v388, 1.442695
    %v522 = vpow.pop %v521
    %v523 = vmul.f32 %v459, 1.442695
    %v524 = vpow.pop %v523
    %v525 = vmul.f32 %v461, 1.442695
    %v526 = vpow.pop %v525
    %v527 = vadd.f32 %v464, 2.0
    %v528 = vadd.f32 %v466, 2.0
    %v529 = vadd.f32 %v468, 2.0
    %v530 = vadd.f32 %v470, 2.0
    %v531 = vadd.f32 %v472, 2.0
    %v532 = vadd.f32 %v474, 2.0
    %v533 = vadd.f32 %v476, 2.0
    %v534 = vadd.f32 %v478, 2.0
    %v535 = vadd.f32 %v480, 2.0
    %v536 = vadd.f32 %v482, 2.0
    %v537 = vadd.f32 %v484, 2.0
    %v538 = vadd.f32 %v486, 2.0
    %v539 = vadd.f32 %v488, 2.0
    %v540 = vadd.f32 %v490, 2.0
    %v541 = vadd.f32 %v492, 2.0
    %v542 = vadd.f32 %v494, 2.0
    %v543 = vadd.f32 %v496, 2.0
    %v544 = vadd.f32 %v498, 2.0
    %v545 = vadd.f32 %v500, 2.0
    %v546 = vadd.f32 %v502, 2.0
    %v547 = vadd.f32 %v504, 2.0
    %v548 = vadd.f32 %v506, 2.0
    %v549 = vadd.f32 %v508, 2.0
    %v550 = vadd.f32 %v510, 2.0
    %v551 = vadd.f32 %v512, 2.0
    %v552 = vadd.f32 %v514, 2.0
    %v553 = vadd.f32 %v516, 2.0
    %v554 = vadd.f32 %v518, 2.0
    %v555 = vadd.f32 %v520, 2.0
    %v556 = vadd.f32 %v522, 2.0
    %v557 = vadd.f32 %v524, 2.0
    %v558 = vadd.f32 %v526, 2.0
    %v559 = vmul.f32 %v464, %v527
    %v560 = vmul.f32 %v466, %v528
    %v561 = vmul.f32 %v468, %v529
    %v562 = vmul.f32 %v470, %v530
    %v563 = vmul.f32 %v472, %v531
    %v564 = vmul.f32 %v474, %v532
    %v565 = vmul.f32 %v476, %v533
    %v566 = vmul.f32 %v478, %v534
    %v567 = vmul.f32 %v480, %v535
    %v568 = vmul.f32 %v482, %v536
    %v569 = vmul.f32 %v484, %v537
    %v570 = vmul.f32 %v486, %v538
    %v571 = vmul.f32 %v488, %v539
    %v572 = vmul.f32 %v490, %v540
    %v573 = vmul.f32 %v492, %v541
    %v574 = vmul.f32 %v494, %v542
    %v575 = vmul.f32 %v496, %v543
    %v576 = vmul.f32 %v498, %v544
    %v577 = vmul.f32 %v500, %v545
    %v578 = vmul.f32 %v502, %v546
    %v579 = vmul.f32 %v504, %v547
    %v580 = vmul.f32 %v506, %v548
    %v581 = vmul.f32 %v508, %v549
    %v582 = vmul.f32 %v510, %v550
    %v583 = vmul.f32 %v512, %v551
    %v584 = vmul.f32 %v514, %v552
    %v585 = vmul.f32 %v516, %v553
    %v586 = vmul.f32 %v518, %v554
    %v587 = vmul.f32 %v520, %v555
    %v588 = vmul.f32 %v522, %v556
    %v589 = vmul.f32 %v524, %v557
    %v590 = vmul.f32 %v526, %v558
    %v591 = vmul.f32 %v352, %v559
    %v592 = vmul.f32 %v354, %v560
    %v593 = vmul.f32 %v425, %v561
    %v594 = vmul.f32 %v427, %v562
    %v595 = vmul.f32 %v356, %v563
    %v596 = vmul.f32 %v358, %v564
    %v597 = vmul.f32 %v429, %v565
    %v598 = vmul.f32 %v431, %v566
    %v599 = vmul.f32 %v362, %v567
    %v600 = vmul.f32 %v364, %v568
    %v601 = vmul.f32 %v435, %v569
    %v602 = vmul.f32 %v437, %v570
    %v603 = vmul.f32 %v366, %v571
    %v604 = vmul.f32 %v368, %v572
    %v605 = vmul.f32 %v439, %v573
    %v606 = vmul.f32 %v441, %v574
    %v607 = vmul.f32 %v372, %v575
    %v608 = vmul.f32 %v374, %v576
    %v609 = vmul.f32 %v445, %v577
    %v610 = vmul.f32 %v447, %v578
    %v611 = vmul.f32 %v376, %v579
    %v612 = vmul.f32 %v378, %v580
    %v613 = vmul.f32 %v449, %v581
    %v614 = vmul.f32 %v451, %v582
    %v615 = vmul.f32 %v382, %v583
    %v616 = vmul.f32 %v384, %v584
    %v617 = vmul.f32 %v455, %v585
    %v618 = vmul.f32 %v457, %v586
    %v619 = vmul.f32 %v386, %v587
    %v620 = vmul.f32 %v388, %v588
    %v621 = vmul.f32 %v459, %v589
    %v622 = vmul.f32 %v461, %v590
    %v623 = vadd.f32 %v559, 2.0
    %v624 = vadd.f32 %v560, 2.0
    %v625 = vadd.f32 %v561, 2.0
    %v626 = vadd.f32 %v562, 2.0
    %v627 = vadd.f32 %v563, 2.0
    %v628 = vadd.f32 %v564, 2.0
    %v629 = vadd.f32 %v565, 2.0
    %v630 = vadd.f32 %v566, 2.0
    %v631 = vadd.f32 %v567, 2.0
    %v632 = vadd.f32 %v568, 2.0
    %v633 = vadd.f32 %v569, 2.0
    %v634 = vadd.f32 %v570, 2.0
    %v635 = vadd.f32 %v571, 2.0
    %v636 = vadd.f32 %v572, 2.0
    %v637 = vadd.f32 %v573, 2.0
    %v638 = vadd.f32 %v574, 2.0
    %v639 = vadd.f32 %v575, 2.0
    %v640 = vadd.f32 %v576, 2.0
    %v641 = vadd.f32 %v577, 2.0
    %v642 = vadd.f32 %v578, 2.0
    %v643 = vadd.f32 %v579, 2.0
    %v644 = vadd.f32 %v580, 2.0
    %v645 = vadd.f32 %v581, 2.0
    %v646 = vadd.f32 %v582, 2.0
    %v647 = vadd.f32 %v583, 2.0
    %v648 = vadd.f32 %v584, 2.0
    %v649 = vadd.f32 %v585, 2.0
    %v650 = vadd.f32 %v586, 2.0
    %v651 = vadd.f32 %v587, 2.0
    %v652 = vadd.f32 %v588, 2.0
    %v653 = vadd.f32 %v589, 2.0
    %v654 = vadd.f32 %v590, 2.0
    %v655 = vrcp.pop %v623
    %v656 = vrcp.pop %v624
    %v657 = vrcp.pop %v625
    %v658 = vrcp.pop %v626
    %v659 = vrcp.pop %v627
    %v660 = vrcp.pop %v628
    %v661 = vrcp.pop %v629
    %v662 = vrcp.pop %v630
    %v663 = vrcp.pop %v631
    %v664 = vrcp.pop %v632
    %v665 = vrcp.pop %v633
    %v666 = vrcp.pop %v634
    %v667 = vrcp.pop %v635
    %v668 = vrcp.pop %v636
    %v669 = vrcp.pop %v637
    %v670 = vrcp.pop %v638
    %v671 = vrcp.pop %v639
    %v672 = vrcp.pop %v640
    %v673 = vrcp.pop %v641
    %v674 = vrcp.pop %v642
    %v675 = vrcp.pop %v643
    %v676 = vrcp.pop %v644
    %v677 = vrcp.pop %v645
    %v678 = vrcp.pop %v646
    %v679 = vrcp.pop %v647
    %v680 = vrcp.pop %v648
    %v681 = vrcp.pop %v649
    %v682 = vrcp.pop %v650
    %v683 = vrcp.pop %v651
    %v684 = vrcp.pop %v652
    %v685 = vrcp.pop %v653
    %v686 = vrcp.pop %v654
    %v687 = vmul.f32 %v591, %v655
    %v688 = vmul.f32 %v592, %v656
    %v689 = vmul.f32 %v593, %v657
    %v690 = vmul.f32 %v594, %v658
    %v691 = vmul.f32 %v595, %v659
    %v692 = vmul.f32 %v596, %v660
    %v693 = vmul.f32 %v597, %v661
    %v694 = vmul.f32 %v598, %v662
    %v695 = vmul.f32 %v599, %v663
    %v696 = vmul.f32 %v600, %v664
    %v697 = vmul.f32 %v601, %v665
    %v698 = vmul.f32 %v602, %v666
    %v699 = vmul.f32 %v603, %v667
    %v700 = vmul.f32 %v604, %v668
    %v701 = vmul.f32 %v605, %v669
    %v702 = vmul.f32 %v606, %v670
    %v703 = vmul.f32 %v607, %v671
    %v704 = vmul.f32 %v608, %v672
    %v705 = vmul.f32 %v609, %v673
    %v706 = vmul.f32 %v610, %v674
    %v707 = vmul.f32 %v611, %v675
    %v708 = vmul.f32 %v612, %v676
    %v709 = vmul.f32 %v613, %v677
    %v710 = vmul.f32 %v614, %v678
    %v711 = vmul.f32 %v615, %v679
    %v712 = vmul.f32 %v616, %v680
    %v713 = vmul.f32 %v617, %v681
    %v714 = vmul.f32 %v618, %v682
    %v715 = vmul.f32 %v619, %v683
    %v716 = vmul.f32 %v620, %v684
    %v717 = vmul.f32 %v621, %v685
    %v718 = vmul.f32 %v622, %v686
    %vm719 = vcmp.gt.f32.partialorder %v352, 20.0
    %vm720 = vcmp.gt.f32.partialorder %v354, 20.0
    %vm721 = vcmp.gt.f32.partialorder %v425, 20.0
    %vm722 = vcmp.gt.f32.partialorder %v427, 20.0
    %vm723 = vcmp.gt.f32.partialorder %v356, 20.0
    %vm724 = vcmp.gt.f32.partialorder %v358, 20.0
    %vm725 = vcmp.gt.f32.partialorder %v429, 20.0
    %vm726 = vcmp.gt.f32.partialorder %v431, 20.0
    %vm727 = vcmp.gt.f32.partialorder %v362, 20.0
    %vm728 = vcmp.gt.f32.partialorder %v364, 20.0
    %vm729 = vcmp.gt.f32.partialorder %v435, 20.0
    %vm730 = vcmp.gt.f32.partialorder %v437, 20.0
    %vm731 = vcmp.gt.f32.partialorder %v366, 20.0
    %vm732 = vcmp.gt.f32.partialorder %v368, 20.0
    %vm733 = vcmp.gt.f32.partialorder %v439, 20.0
    %vm734 = vcmp.gt.f32.partialorder %v441, 20.0
    %vm735 = vcmp.gt.f32.partialorder %v372, 20.0
    %vm736 = vcmp.gt.f32.partialorder %v374, 20.0
    %vm737 = vcmp.gt.f32.partialorder %v445, 20.0
    %vm738 = vcmp.gt.f32.partialorder %v447, 20.0
    %vm739 = vcmp.gt.f32.partialorder %v376, 20.0
    %vm740 = vcmp.gt.f32.partialorder %v378, 20.0
    %vm741 = vcmp.gt.f32.partialorder %v449, 20.0
    %vm742 = vcmp.gt.f32.partialorder %v451, 20.0
    %vm743 = vcmp.gt.f32.partialorder %v382, 20.0
    %vm744 = vcmp.gt.f32.partialorder %v384, 20.0
    %vm745 = vcmp.gt.f32.partialorder %v455, 20.0
    %vm746 = vcmp.gt.f32.partialorder %v457, 20.0
    %vm747 = vcmp.gt.f32.partialorder %v386, 20.0
    %vm748 = vcmp.gt.f32.partialorder %v388, 20.0
    %vm749 = vcmp.gt.f32.partialorder %v459, 20.0
    %vm750 = vcmp.gt.f32.partialorder %v461, 20.0
    %v751 = vsel %vm719, %v352, %v687
    %v752 = vsel %vm720, %v354, %v688
    %v753 = vsel %vm721, %v425, %v689
    %v754 = vsel %vm722, %v427, %v690
    %v755 = vsel %vm723, %v356, %v691
    %v756 = vsel %vm724, %v358, %v692
    %v757 = vsel %vm725, %v429, %v693
    %v758 = vsel %vm726, %v431, %v694
    %v759 = vsel %vm727, %v362, %v695
    %v760 = vsel %vm728, %v364, %v696
    %v761 = vsel %vm729, %v435, %v697
    %v762 = vsel %vm730, %v437, %v698
    %v763 = vsel %vm731, %v366, %v699
    %v764 = vsel %vm732, %v368, %v700
    %v765 = vsel %vm733, %v439, %v701
    %v766 = vsel %vm734, %v441, %v702
    %v767 = vsel %vm735, %v372, %v703
    %v768 = vsel %vm736, %v374, %v704
    %v769 = vsel %vm737, %v445, %v705
    %v770 = vsel %vm738, %v447, %v706
    %v771 = vsel %vm739, %v376, %v707
    %v772 = vsel %vm740, %v378, %v708
    %v773 = vsel %vm741, %v449, %v709
    %v774 = vsel %vm742, %v451, %v710
    %v775 = vsel %vm743, %v382, %v711
    %v776 = vsel %vm744, %v384, %v712
    %v777 = vsel %vm745, %v455, %v713
    %v778 = vsel %vm746, %v457, %v714
    %v779 = vsel %vm747, %v386, %v715
    %v780 = vsel %vm748, %v388, %v716
    %v781 = vsel %vm749, %v459, %v717
    %v782 = vsel %vm750, %v461, %v718
    %v783 = vpack.c.bf16 %v755, %v751
    %v784 = vpack.c.bf16 %v756, %v752
    %v785 = vpack.c.bf16 %v757, %v753
    %v786 = vpack.c.bf16 %v758, %v754
    %v787 = vpack.c.bf16 %v763, %v759
    %v788 = vpack.c.bf16 %v764, %v760
    %v789 = vpack.c.bf16 %v765, %v761
    %v790 = vpack.c.bf16 %v766, %v762
    %v791 = vpack.c.bf16 %v771, %v767
    %v792 = vpack.c.bf16 %v772, %v768
    %v793 = vpack.c.bf16 %v773, %v769
    %v794 = vpack.c.bf16 %v774, %v770
    %v795 = vpack.c.bf16 %v779, %v775
    %v796 = vpack.c.bf16 %v780, %v776
    %v797 = vpack.c.bf16 %v781, %v777
    %v798 = vpack.c.bf16 %v782, %v778
    %v799 = vld [vmem:[%s3] sm:$0xf]
    %v800 = vld [vmem:[%s3 + $0x4] sm:$0xf]
    %v801 = vld [vmem:[%s3 + $0x8] sm:$0xf]
    %v802 = vld [vmem:[%s3 + $0xc] sm:$0xf]
    %v803 = vld [vmem:[%s3 + $0x10] sm:$0xf]
    %v804 = vld [vmem:[%s3 + $0x14] sm:$0xf]
    %v805 = vld [vmem:[%s3 + $0x18] sm:$0xf]
    %v806 = vld [vmem:[%s3 + $0x1c] sm:$0xf]
    %v807 = vld [vmem:[%s4] sm:$0xff]
    %v808 = vld [vmem:[%s4 + $0x8] sm:$0xff]
    %v809 = vld [vmem:[%s4 + $0x10] sm:$0xff]
    %v810 = vld [vmem:[%s4 + $0x18] sm:$0xff]
    %v811 = vld [vmem:[%s4 + $0x20] sm:$0xff]
    %v812 = vld [vmem:[%s4 + $0x28] sm:$0xff]
    %v813 = vld [vmem:[%s4 + $0x30] sm:$0xff]
    %v814 = vld [vmem:[%s4 + $0x38] sm:$0xff]
    %816 = vset.pattern.permute.xlu0 0
    %817 = vperm.xlu0 %816, %v807
    %v818 = vpop.permute.xlu0 %817
    %821 = vset.pattern.permute.xlu0 0
    %822 = vperm.xlu0 %821, %v808
    %v823 = vpop.permute.xlu0 %822
    %826 = vset.pattern.permute.xlu0 0
    %827 = vperm.xlu0 %826, %v809
    %v828 = vpop.permute.xlu0 %827
    %831 = vset.pattern.permute.xlu0 0
    %832 = vperm.xlu0 %831, %v810
    %v833 = vpop.permute.xlu0 %832
    %836 = vset.pattern.permute.xlu0 0
    %837 = vperm.xlu0 %836, %v811
    %v838 = vpop.permute.xlu0 %837
    %841 = vset.pattern.permute.xlu0 0
    %842 = vperm.xlu0 %841, %v812
    %v843 = vpop.permute.xlu0 %842
    %846 = vset.pattern.permute.xlu0 0
    %847 = vperm.xlu0 %846, %v813
    %v848 = vpop.permute.xlu0 %847
    %851 = vset.pattern.permute.xlu0 0
    %852 = vperm.xlu0 %851, %v814
    %v853 = vpop.permute.xlu0 %852
    %v863 = vunpack.c.l.b16 %v799
    %v864 = vunpack.c.l.b16 %v800
    %v865 = vunpack.c.l.b16 %v801
    %v866 = vunpack.c.l.b16 %v802
    %v867 = vunpack.c.l.b16 %v803
    %v868 = vunpack.c.l.b16 %v804
    %v869 = vunpack.c.l.b16 %v805
    %v870 = vunpack.c.l.b16 %v806
    %v871 = vpack.c.b16 %v864, %v863
    %v872 = vpack.c.b16 %v866, %v865
    %v873 = vpack.c.b16 %v868, %v867
    %v874 = vpack.c.b16 %v870, %v869
    %vm875 = vcmask 523264
    %v877 = vsel %vm875, %v871, 0
    %v880 = vsel %vm875, %v872, 0
    %v883 = vsel %vm875, %v873, 0
    %v886 = vsel %vm875, %v874, 0
    %888 = vmatprep.subr.bf16.mxu0 0
    %889 = vmatpush1.bf16.msra.mxu0 0
    %890 = vmatprep.subr.bf16.mxu0 0
    %891 = vmatpush1.bf16.msra.mxu0 0
    %892 = vmatprep.subr.bf16.mxu0 0
    %893 = vmatpush1.bf16.msra.mxu0 0
    %894 = vmatprep.subr.bf16.mxu0 0
    %895 = vmatpush1.bf16.msra.mxu0 0
    %896 = vmatprep.subr.bf16.mxu0 %v796
    %897 = vmatpush1.bf16.msra.mxu0 %v795
    %898 = vmatprep.subr.bf16.mxu0 %v792
    %899 = vmatpush1.bf16.msra.mxu0 %v791
    %900 = vmatprep.subr.bf16.mxu0 %v788
    %901 = vmatpush1.bf16.msra.mxu0 %v787
    %902 = vmatprep.subr.bf16.mxu0 %v784
    %903 = vmatpush1.bf16.msra.mxu0 %v783
    %904 = vmatprep.subr.bf16.mxu0 0
    %905 = vmatpush2.bf16.msra.mxu0 0
    %906 = vmatprep.subr.bf16.mxu0 0
    %907 = vmatpush2.bf16.msra.mxu0 0
    %908 = vmatprep.subr.bf16.mxu0 0
    %909 = vmatpush2.bf16.msra.mxu0 0
    %910 = vmatprep.subr.bf16.mxu0 0
    %911 = vmatpush2.bf16.msra.mxu0 0
    %912 = vmatprep.subr.bf16.mxu0 0
    %913 = vmatpush2.bf16.msra.mxu0 0
    %914 = vmatprep.subr.bf16.mxu0 0
    %915 = vmatpush2.bf16.msra.mxu0 0
    %916 = vmatprep.subr.bf16.mxu0 0
    %917 = vmatpush2.bf16.msra.mxu0 0
    %918 = vmatprep.subr.bf16.mxu0 0
    %919 = vmatpush2.bf16.msra.mxu0 0
    %920 = vmatprep.mubr.bf16.mxu0 0
    %921 = vmatmul.mubr.bf16.gmra.mxu0 %v877
    %v922 = vpop.f32.mrf.mxu0
    %v923 = vadd.f32 %v818, %v922
    %v924 = vpop.f32.mrf.mxu0
    %v925 = vadd.f32 %v818, %v924
    %v926 = vpop.f32.mrf.mxu0
    %v927 = vadd.f32 %v823, %v926
    %v928 = vpop.f32.mrf.mxu0
    %v929 = vadd.f32 %v823, %v928
    %930 = vmatprep.mubr.bf16.mxu0 0
    %931 = vmatmul.mubr.bf16.gmra.mxu0 %v880
    %v932 = vpop.f32.mrf.mxu0
    %v933 = vadd.f32 %v828, %v932
    %v934 = vpop.f32.mrf.mxu0
    %v935 = vadd.f32 %v828, %v934
    %v936 = vpop.f32.mrf.mxu0
    %v937 = vadd.f32 %v833, %v936
    %v938 = vpop.f32.mrf.mxu0
    %v939 = vadd.f32 %v833, %v938
    %940 = vmatprep.mubr.bf16.mxu0 0
    %941 = vmatmul.mubr.bf16.gmra.mxu0 %v883
    %v942 = vpop.f32.mrf.mxu0
    %v943 = vadd.f32 %v838, %v942
    %v944 = vpop.f32.mrf.mxu0
    %v945 = vadd.f32 %v838, %v944
    %v946 = vpop.f32.mrf.mxu0
    %v947 = vadd.f32 %v843, %v946
    %v948 = vpop.f32.mrf.mxu0
    %v949 = vadd.f32 %v843, %v948
    %950 = vmatprep.mubr.bf16.mxu0 0
    %951 = vmatmul.mubr.bf16.gmra.mxu0 %v886
    %v952 = vpop.f32.mrf.mxu0
    %v953 = vadd.f32 %v848, %v952
    %v954 = vpop.f32.mrf.mxu0
    %v955 = vadd.f32 %v848, %v954
    %v956 = vpop.f32.mrf.mxu0
    %v957 = vadd.f32 %v853, %v956
    %v958 = vpop.f32.mrf.mxu0
    %v959 = vadd.f32 %v853, %v958
    %960 = vdwg.mxu0
    %961 = vmatprep.subr.bf16.mxu0 0
    %962 = vmatpush1.bf16.msra.mxu0 0
    %963 = vmatprep.subr.bf16.mxu0 0
    %964 = vmatpush1.bf16.msra.mxu0 0
    %965 = vmatprep.subr.bf16.mxu0 0
    %966 = vmatpush1.bf16.msra.mxu0 0
    %967 = vmatprep.subr.bf16.mxu0 0
    %968 = vmatpush1.bf16.msra.mxu0 0
    %969 = vmatprep.subr.bf16.mxu0 %v798
    %970 = vmatpush1.bf16.msra.mxu0 %v797
    %971 = vmatprep.subr.bf16.mxu0 %v794
    %972 = vmatpush1.bf16.msra.mxu0 %v793
    %973 = vmatprep.subr.bf16.mxu0 %v790
    %974 = vmatpush1.bf16.msra.mxu0 %v789
    %975 = vmatprep.subr.bf16.mxu0 %v786
    %976 = vmatpush1.bf16.msra.mxu0 %v785
    %977 = vmatprep.subr.bf16.mxu0 0
    %978 = vmatpush2.bf16.msra.mxu0 0
    %979 = vmatprep.subr.bf16.mxu0 0
    %980 = vmatpush2.bf16.msra.mxu0 0
    %981 = vmatprep.subr.bf16.mxu0 0
    %982 = vmatpush2.bf16.msra.mxu0 0
    %983 = vmatprep.subr.bf16.mxu0 0
    %984 = vmatpush2.bf16.msra.mxu0 0
    %985 = vmatprep.subr.bf16.mxu0 0
    %986 = vmatpush2.bf16.msra.mxu0 0
    %987 = vmatprep.subr.bf16.mxu0 0
    %988 = vmatpush2.bf16.msra.mxu0 0
    %989 = vmatprep.subr.bf16.mxu0 0
    %990 = vmatpush2.bf16.msra.mxu0 0
    %991 = vmatprep.subr.bf16.mxu0 0
    %992 = vmatpush2.bf16.msra.mxu0 0
    %993 = vmatprep.mubr.bf16.mxu0 0
    %994 = vmatmul.mubr.bf16.gmra.mxu0 %v877
    %v995 = vpop.f32.mrf.mxu0
    %v996 = vadd.f32 %v818, %v995
    %v997 = vpop.f32.mrf.mxu0
    %v998 = vadd.f32 %v818, %v997
    %v999 = vpop.f32.mrf.mxu0
    %v1000 = vadd.f32 %v823, %v999
    %v1001 = vpop.f32.mrf.mxu0
    %v1002 = vadd.f32 %v823, %v1001
    %1003 = vmatprep.mubr.bf16.mxu0 0
    %1004 = vmatmul.mubr.bf16.gmra.mxu0 %v880
    %v1005 = vpop.f32.mrf.mxu0
    %v1006 = vadd.f32 %v828, %v1005
    %v1007 = vpop.f32.mrf.mxu0
    %v1008 = vadd.f32 %v828, %v1007
    %v1009 = vpop.f32.mrf.mxu0
    %v1010 = vadd.f32 %v833, %v1009
    %v1011 = vpop.f32.mrf.mxu0
    %v1012 = vadd.f32 %v833, %v1011
    %1013 = vmatprep.mubr.bf16.mxu0 0
    %1014 = vmatmul.mubr.bf16.gmra.mxu0 %v883
    %v1015 = vpop.f32.mrf.mxu0
    %v1016 = vadd.f32 %v838, %v1015
    %v1017 = vpop.f32.mrf.mxu0
    %v1018 = vadd.f32 %v838, %v1017
    %v1019 = vpop.f32.mrf.mxu0
    %v1020 = vadd.f32 %v843, %v1019
    %v1021 = vpop.f32.mrf.mxu0
    %v1022 = vadd.f32 %v843, %v1021
    %1023 = vmatprep.mubr.bf16.mxu0 0
    %1024 = vmatmul.mubr.bf16.gmra.mxu0 %v886
    %v1025 = vpop.f32.mrf.mxu0
    %v1026 = vadd.f32 %v848, %v1025
    %v1027 = vpop.f32.mrf.mxu0
    %v1028 = vadd.f32 %v848, %v1027
    %v1029 = vpop.f32.mrf.mxu0
    %v1030 = vadd.f32 %v853, %v1029
    %v1031 = vpop.f32.mrf.mxu0
    %v1032 = vadd.f32 %v853, %v1031
    %1033 = vdwg.mxu0
    %v1034 = vmul.f32 %v923, 1.442695
    %v1035 = vpow.pop %v1034
    %v1036 = vmul.f32 %v925, 1.442695
    %v1037 = vpow.pop %v1036
    %v1038 = vmul.f32 %v996, 1.442695
    %v1039 = vpow.pop %v1038
    %v1040 = vmul.f32 %v998, 1.442695
    %v1041 = vpow.pop %v1040
    %v1042 = vmul.f32 %v927, 1.442695
    %v1043 = vpow.pop %v1042
    %v1044 = vmul.f32 %v929, 1.442695
    %v1045 = vpow.pop %v1044
    %v1046 = vmul.f32 %v1000, 1.442695
    %v1047 = vpow.pop %v1046
    %v1048 = vmul.f32 %v1002, 1.442695
    %v1049 = vpow.pop %v1048
    %v1050 = vmul.f32 %v933, 1.442695
    %v1051 = vpow.pop %v1050
    %v1052 = vmul.f32 %v935, 1.442695
    %v1053 = vpow.pop %v1052
    %v1054 = vmul.f32 %v1006, 1.442695
    %v1055 = vpow.pop %v1054
    %v1056 = vmul.f32 %v1008, 1.442695
    %v1057 = vpow.pop %v1056
    %v1058 = vmul.f32 %v937, 1.442695
    %v1059 = vpow.pop %v1058
    %v1060 = vmul.f32 %v939, 1.442695
    %v1061 = vpow.pop %v1060
    %v1062 = vmul.f32 %v1010, 1.442695
    %v1063 = vpow.pop %v1062
    %v1064 = vmul.f32 %v1012, 1.442695
    %v1065 = vpow.pop %v1064
    %v1066 = vmul.f32 %v943, 1.442695
    %v1067 = vpow.pop %v1066
    %v1068 = vmul.f32 %v945, 1.442695
    %v1069 = vpow.pop %v1068
    %v1070 = vmul.f32 %v1016, 1.442695
    %v1071 = vpow.pop %v1070
    %v1072 = vmul.f32 %v1018, 1.442695
    %v1073 = vpow.pop %v1072
    %v1074 = vmul.f32 %v947, 1.442695
    %v1075 = vpow.pop %v1074
    %v1076 = vmul.f32 %v949, 1.442695
    %v1077 = vpow.pop %v1076
    %v1078 = vmul.f32 %v1020, 1.442695
    %v1079 = vpow.pop %v1078
    %v1080 = vmul.f32 %v1022, 1.442695
    %v1081 = vpow.pop %v1080
    %v1082 = vmul.f32 %v953, 1.442695
    %v1083 = vpow.pop %v1082
    %v1084 = vmul.f32 %v955, 1.442695
    %v1085 = vpow.pop %v1084
    %v1086 = vmul.f32 %v1026, 1.442695
    %v1087 = vpow.pop %v1086
    %v1088 = vmul.f32 %v1028, 1.442695
    %v1089 = vpow.pop %v1088
    %v1090 = vmul.f32 %v957, 1.442695
    %v1091 = vpow.pop %v1090
    %v1092 = vmul.f32 %v959, 1.442695
    %v1093 = vpow.pop %v1092
    %v1094 = vmul.f32 %v1030, 1.442695
    %v1095 = vpow.pop %v1094
    %v1096 = vmul.f32 %v1032, 1.442695
    %v1097 = vpow.pop %v1096
    %v1098 = vadd.f32 %v1035, 2.0
    %v1099 = vadd.f32 %v1037, 2.0
    %v1100 = vadd.f32 %v1039, 2.0
    %v1101 = vadd.f32 %v1041, 2.0
    %v1102 = vadd.f32 %v1043, 2.0
    %v1103 = vadd.f32 %v1045, 2.0
    %v1104 = vadd.f32 %v1047, 2.0
    %v1105 = vadd.f32 %v1049, 2.0
    %v1106 = vadd.f32 %v1051, 2.0
    %v1107 = vadd.f32 %v1053, 2.0
    %v1108 = vadd.f32 %v1055, 2.0
    %v1109 = vadd.f32 %v1057, 2.0
    %v1110 = vadd.f32 %v1059, 2.0
    %v1111 = vadd.f32 %v1061, 2.0
    %v1112 = vadd.f32 %v1063, 2.0
    %v1113 = vadd.f32 %v1065, 2.0
    %v1114 = vadd.f32 %v1067, 2.0
    %v1115 = vadd.f32 %v1069, 2.0
    %v1116 = vadd.f32 %v1071, 2.0
    %v1117 = vadd.f32 %v1073, 2.0
    %v1118 = vadd.f32 %v1075, 2.0
    %v1119 = vadd.f32 %v1077, 2.0
    %v1120 = vadd.f32 %v1079, 2.0
    %v1121 = vadd.f32 %v1081, 2.0
    %v1122 = vadd.f32 %v1083, 2.0
    %v1123 = vadd.f32 %v1085, 2.0
    %v1124 = vadd.f32 %v1087, 2.0
    %v1125 = vadd.f32 %v1089, 2.0
    %v1126 = vadd.f32 %v1091, 2.0
    %v1127 = vadd.f32 %v1093, 2.0
    %v1128 = vadd.f32 %v1095, 2.0
    %v1129 = vadd.f32 %v1097, 2.0
    %v1130 = vmul.f32 %v1035, %v1098
    %v1131 = vmul.f32 %v1037, %v1099
    %v1132 = vmul.f32 %v1039, %v1100
    %v1133 = vmul.f32 %v1041, %v1101
    %v1134 = vmul.f32 %v1043, %v1102
    %v1135 = vmul.f32 %v1045, %v1103
    %v1136 = vmul.f32 %v1047, %v1104
    %v1137 = vmul.f32 %v1049, %v1105
    %v1138 = vmul.f32 %v1051, %v1106
    %v1139 = vmul.f32 %v1053, %v1107
    %v1140 = vmul.f32 %v1055, %v1108
    %v1141 = vmul.f32 %v1057, %v1109
    %v1142 = vmul.f32 %v1059, %v1110
    %v1143 = vmul.f32 %v1061, %v1111
    %v1144 = vmul.f32 %v1063, %v1112
    %v1145 = vmul.f32 %v1065, %v1113
    %v1146 = vmul.f32 %v1067, %v1114
    %v1147 = vmul.f32 %v1069, %v1115
    %v1148 = vmul.f32 %v1071, %v1116
    %v1149 = vmul.f32 %v1073, %v1117
    %v1150 = vmul.f32 %v1075, %v1118
    %v1151 = vmul.f32 %v1077, %v1119
    %v1152 = vmul.f32 %v1079, %v1120
    %v1153 = vmul.f32 %v1081, %v1121
    %v1154 = vmul.f32 %v1083, %v1122
    %v1155 = vmul.f32 %v1085, %v1123
    %v1156 = vmul.f32 %v1087, %v1124
    %v1157 = vmul.f32 %v1089, %v1125
    %v1158 = vmul.f32 %v1091, %v1126
    %v1159 = vmul.f32 %v1093, %v1127
    %v1160 = vmul.f32 %v1095, %v1128
    %v1161 = vmul.f32 %v1097, %v1129
    %v1162 = vmul.f32 %v923, %v1130
    %v1163 = vmul.f32 %v925, %v1131
    %v1164 = vmul.f32 %v996, %v1132
    %v1165 = vmul.f32 %v998, %v1133
    %v1166 = vmul.f32 %v927, %v1134
    %v1167 = vmul.f32 %v929, %v1135
    %v1168 = vmul.f32 %v1000, %v1136
    %v1169 = vmul.f32 %v1002, %v1137
    %v1170 = vmul.f32 %v933, %v1138
    %v1171 = vmul.f32 %v935, %v1139
    %v1172 = vmul.f32 %v1006, %v1140
    %v1173 = vmul.f32 %v1008, %v1141
    %v1174 = vmul.f32 %v937, %v1142
    %v1175 = vmul.f32 %v939, %v1143
    %v1176 = vmul.f32 %v1010, %v1144
    %v1177 = vmul.f32 %v1012, %v1145
    %v1178 = vmul.f32 %v943, %v1146
    %v1179 = vmul.f32 %v945, %v1147
    %v1180 = vmul.f32 %v1016, %v1148
    %v1181 = vmul.f32 %v1018, %v1149
    %v1182 = vmul.f32 %v947, %v1150
    %v1183 = vmul.f32 %v949, %v1151
    %v1184 = vmul.f32 %v1020, %v1152
    %v1185 = vmul.f32 %v1022, %v1153
    %v1186 = vmul.f32 %v953, %v1154
    %v1187 = vmul.f32 %v955, %v1155
    %v1188 = vmul.f32 %v1026, %v1156
    %v1189 = vmul.f32 %v1028, %v1157
    %v1190 = vmul.f32 %v957, %v1158
    %v1191 = vmul.f32 %v959, %v1159
    %v1192 = vmul.f32 %v1030, %v1160
    %v1193 = vmul.f32 %v1032, %v1161
    %v1194 = vadd.f32 %v1130, 2.0
    %v1195 = vadd.f32 %v1131, 2.0
    %v1196 = vadd.f32 %v1132, 2.0
    %v1197 = vadd.f32 %v1133, 2.0
    %v1198 = vadd.f32 %v1134, 2.0
    %v1199 = vadd.f32 %v1135, 2.0
    %v1200 = vadd.f32 %v1136, 2.0
    %v1201 = vadd.f32 %v1137, 2.0
    %v1202 = vadd.f32 %v1138, 2.0
    %v1203 = vadd.f32 %v1139, 2.0
    %v1204 = vadd.f32 %v1140, 2.0
    %v1205 = vadd.f32 %v1141, 2.0
    %v1206 = vadd.f32 %v1142, 2.0
    %v1207 = vadd.f32 %v1143, 2.0
    %v1208 = vadd.f32 %v1144, 2.0
    %v1209 = vadd.f32 %v1145, 2.0
    %v1210 = vadd.f32 %v1146, 2.0
    %v1211 = vadd.f32 %v1147, 2.0
    %v1212 = vadd.f32 %v1148, 2.0
    %v1213 = vadd.f32 %v1149, 2.0
    %v1214 = vadd.f32 %v1150, 2.0
    %v1215 = vadd.f32 %v1151, 2.0
    %v1216 = vadd.f32 %v1152, 2.0
    %v1217 = vadd.f32 %v1153, 2.0
    %v1218 = vadd.f32 %v1154, 2.0
    %v1219 = vadd.f32 %v1155, 2.0
    %v1220 = vadd.f32 %v1156, 2.0
    %v1221 = vadd.f32 %v1157, 2.0
    %v1222 = vadd.f32 %v1158, 2.0
    %v1223 = vadd.f32 %v1159, 2.0
    %v1224 = vadd.f32 %v1160, 2.0
    %v1225 = vadd.f32 %v1161, 2.0
    %v1226 = vrcp.pop %v1194
    %v1227 = vrcp.pop %v1195
    %v1228 = vrcp.pop %v1196
    %v1229 = vrcp.pop %v1197
    %v1230 = vrcp.pop %v1198
    %v1231 = vrcp.pop %v1199
    %v1232 = vrcp.pop %v1200
    %v1233 = vrcp.pop %v1201
    %v1234 = vrcp.pop %v1202
    %v1235 = vrcp.pop %v1203
    %v1236 = vrcp.pop %v1204
    %v1237 = vrcp.pop %v1205
    %v1238 = vrcp.pop %v1206
    %v1239 = vrcp.pop %v1207
    %v1240 = vrcp.pop %v1208
    %v1241 = vrcp.pop %v1209
    %v1242 = vrcp.pop %v1210
    %v1243 = vrcp.pop %v1211
    %v1244 = vrcp.pop %v1212
    %v1245 = vrcp.pop %v1213
    %v1246 = vrcp.pop %v1214
    %v1247 = vrcp.pop %v1215
    %v1248 = vrcp.pop %v1216
    %v1249 = vrcp.pop %v1217
    %v1250 = vrcp.pop %v1218
    %v1251 = vrcp.pop %v1219
    %v1252 = vrcp.pop %v1220
    %v1253 = vrcp.pop %v1221
    %v1254 = vrcp.pop %v1222
    %v1255 = vrcp.pop %v1223
    %v1256 = vrcp.pop %v1224
    %v1257 = vrcp.pop %v1225
    %v1258 = vmul.f32 %v1162, %v1226
    %v1259 = vmul.f32 %v1163, %v1227
    %v1260 = vmul.f32 %v1164, %v1228
    %v1261 = vmul.f32 %v1165, %v1229
    %v1262 = vmul.f32 %v1166, %v1230
    %v1263 = vmul.f32 %v1167, %v1231
    %v1264 = vmul.f32 %v1168, %v1232
    %v1265 = vmul.f32 %v1169, %v1233
    %v1266 = vmul.f32 %v1170, %v1234
    %v1267 = vmul.f32 %v1171, %v1235
    %v1268 = vmul.f32 %v1172, %v1236
    %v1269 = vmul.f32 %v1173, %v1237
    %v1270 = vmul.f32 %v1174, %v1238
    %v1271 = vmul.f32 %v1175, %v1239
    %v1272 = vmul.f32 %v1176, %v1240
    %v1273 = vmul.f32 %v1177, %v1241
    %v1274 = vmul.f32 %v1178, %v1242
    %v1275 = vmul.f32 %v1179, %v1243
    %v1276 = vmul.f32 %v1180, %v1244
    %v1277 = vmul.f32 %v1181, %v1245
    %v1278 = vmul.f32 %v1182, %v1246
    %v1279 = vmul.f32 %v1183, %v1247
    %v1280 = vmul.f32 %v1184, %v1248
    %v1281 = vmul.f32 %v1185, %v1249
    %v1282 = vmul.f32 %v1186, %v1250
    %v1283 = vmul.f32 %v1187, %v1251
    %v1284 = vmul.f32 %v1188, %v1252
    %v1285 = vmul.f32 %v1189, %v1253
    %v1286 = vmul.f32 %v1190, %v1254
    %v1287 = vmul.f32 %v1191, %v1255
    %v1288 = vmul.f32 %v1192, %v1256
    %v1289 = vmul.f32 %v1193, %v1257
    %vm1290 = vcmp.gt.f32.partialorder %v923, 20.0
    %vm1291 = vcmp.gt.f32.partialorder %v925, 20.0
    %vm1292 = vcmp.gt.f32.partialorder %v996, 20.0
    %vm1293 = vcmp.gt.f32.partialorder %v998, 20.0
    %vm1294 = vcmp.gt.f32.partialorder %v927, 20.0
    %vm1295 = vcmp.gt.f32.partialorder %v929, 20.0
    %vm1296 = vcmp.gt.f32.partialorder %v1000, 20.0
    %vm1297 = vcmp.gt.f32.partialorder %v1002, 20.0
    %vm1298 = vcmp.gt.f32.partialorder %v933, 20.0
    %vm1299 = vcmp.gt.f32.partialorder %v935, 20.0
    %vm1300 = vcmp.gt.f32.partialorder %v1006, 20.0
    %vm1301 = vcmp.gt.f32.partialorder %v1008, 20.0
    %vm1302 = vcmp.gt.f32.partialorder %v937, 20.0
    %vm1303 = vcmp.gt.f32.partialorder %v939, 20.0
    %vm1304 = vcmp.gt.f32.partialorder %v1010, 20.0
    %vm1305 = vcmp.gt.f32.partialorder %v1012, 20.0
    %vm1306 = vcmp.gt.f32.partialorder %v943, 20.0
    %vm1307 = vcmp.gt.f32.partialorder %v945, 20.0
    %vm1308 = vcmp.gt.f32.partialorder %v1016, 20.0
    %vm1309 = vcmp.gt.f32.partialorder %v1018, 20.0
    %vm1310 = vcmp.gt.f32.partialorder %v947, 20.0
    %vm1311 = vcmp.gt.f32.partialorder %v949, 20.0
    %vm1312 = vcmp.gt.f32.partialorder %v1020, 20.0
    %vm1313 = vcmp.gt.f32.partialorder %v1022, 20.0
    %vm1314 = vcmp.gt.f32.partialorder %v953, 20.0
    %vm1315 = vcmp.gt.f32.partialorder %v955, 20.0
    %vm1316 = vcmp.gt.f32.partialorder %v1026, 20.0
    %vm1317 = vcmp.gt.f32.partialorder %v1028, 20.0
    %vm1318 = vcmp.gt.f32.partialorder %v957, 20.0
    %vm1319 = vcmp.gt.f32.partialorder %v959, 20.0
    %vm1320 = vcmp.gt.f32.partialorder %v1030, 20.0
    %vm1321 = vcmp.gt.f32.partialorder %v1032, 20.0
    %v1322 = vsel %vm1290, %v923, %v1258
    %v1323 = vsel %vm1291, %v925, %v1259
    %v1324 = vsel %vm1292, %v996, %v1260
    %v1325 = vsel %vm1293, %v998, %v1261
    %v1326 = vsel %vm1294, %v927, %v1262
    %v1327 = vsel %vm1295, %v929, %v1263
    %v1328 = vsel %vm1296, %v1000, %v1264
    %v1329 = vsel %vm1297, %v1002, %v1265
    %v1330 = vsel %vm1298, %v933, %v1266
    %v1331 = vsel %vm1299, %v935, %v1267
    %v1332 = vsel %vm1300, %v1006, %v1268
    %v1333 = vsel %vm1301, %v1008, %v1269
    %v1334 = vsel %vm1302, %v937, %v1270
    %v1335 = vsel %vm1303, %v939, %v1271
    %v1336 = vsel %vm1304, %v1010, %v1272
    %v1337 = vsel %vm1305, %v1012, %v1273
    %v1338 = vsel %vm1306, %v943, %v1274
    %v1339 = vsel %vm1307, %v945, %v1275
    %v1340 = vsel %vm1308, %v1016, %v1276
    %v1341 = vsel %vm1309, %v1018, %v1277
    %v1342 = vsel %vm1310, %v947, %v1278
    %v1343 = vsel %vm1311, %v949, %v1279
    %v1344 = vsel %vm1312, %v1020, %v1280
    %v1345 = vsel %vm1313, %v1022, %v1281
    %v1346 = vsel %vm1314, %v953, %v1282
    %v1347 = vsel %vm1315, %v955, %v1283
    %v1348 = vsel %vm1316, %v1026, %v1284
    %v1349 = vsel %vm1317, %v1028, %v1285
    %v1350 = vsel %vm1318, %v957, %v1286
    %v1351 = vsel %vm1319, %v959, %v1287
    %v1352 = vsel %vm1320, %v1030, %v1288
    %v1353 = vsel %vm1321, %v1032, %v1289
    %v1354 = vpack.c.bf16 %v1326, %v1322
    %v1355 = vpack.c.bf16 %v1327, %v1323
    %v1356 = vpack.c.bf16 %v1328, %v1324
    %v1357 = vpack.c.bf16 %v1329, %v1325
    %v1358 = vpack.c.bf16 %v1334, %v1330
    %v1359 = vpack.c.bf16 %v1335, %v1331
    %v1360 = vpack.c.bf16 %v1336, %v1332
    %v1361 = vpack.c.bf16 %v1337, %v1333
    %v1362 = vpack.c.bf16 %v1342, %v1338
    %v1363 = vpack.c.bf16 %v1343, %v1339
    %v1364 = vpack.c.bf16 %v1344, %v1340
    %v1365 = vpack.c.bf16 %v1345, %v1341
    %v1366 = vpack.c.bf16 %v1350, %v1346
    %v1367 = vpack.c.bf16 %v1351, %v1347
    %v1368 = vpack.c.bf16 %v1352, %v1348
    %v1369 = vpack.c.bf16 %v1353, %v1349
    %v1370 = vld [vmem:[%s5] sm:$0xf]
    %v1371 = vld [vmem:[%s5 + $0x4] sm:$0xf]
    %v1372 = vld [vmem:[%s5 + $0x8] sm:$0xf]
    %v1373 = vld [vmem:[%s5 + $0xc] sm:$0xf]
    %v1374 = vld [vmem:[%s5 + $0x10] sm:$0xf]
    %v1375 = vld [vmem:[%s5 + $0x14] sm:$0xf]
    %v1376 = vld [vmem:[%s5 + $0x18] sm:$0xf]
    %v1377 = vld [vmem:[%s5 + $0x1c] sm:$0xf]
    %v1378 = vld [vmem:[%s6] sm:$0xff]
    %v1379 = vld [vmem:[%s6 + $0x8] sm:$0xff]
    %v1380 = vld [vmem:[%s6 + $0x10] sm:$0xff]
    %v1381 = vld [vmem:[%s6 + $0x18] sm:$0xff]
    %v1382 = vld [vmem:[%s6 + $0x20] sm:$0xff]
    %v1383 = vld [vmem:[%s6 + $0x28] sm:$0xff]
    %v1384 = vld [vmem:[%s6 + $0x30] sm:$0xff]
    %v1385 = vld [vmem:[%s6 + $0x38] sm:$0xff]
    %1387 = vset.pattern.permute.xlu0 0
    %1388 = vperm.xlu0 %1387, %v1378
    %v1389 = vpop.permute.xlu0 %1388
    %1392 = vset.pattern.permute.xlu0 0
    %1393 = vperm.xlu0 %1392, %v1379
    %v1394 = vpop.permute.xlu0 %1393
    %1397 = vset.pattern.permute.xlu0 0
    %1398 = vperm.xlu0 %1397, %v1380
    %v1399 = vpop.permute.xlu0 %1398
    %1402 = vset.pattern.permute.xlu0 0
    %1403 = vperm.xlu0 %1402, %v1381
    %v1404 = vpop.permute.xlu0 %1403
    %1407 = vset.pattern.permute.xlu0 0
    %1408 = vperm.xlu0 %1407, %v1382
    %v1409 = vpop.permute.xlu0 %1408
    %1412 = vset.pattern.permute.xlu0 0
    %1413 = vperm.xlu0 %1412, %v1383
    %v1414 = vpop.permute.xlu0 %1413
    %1417 = vset.pattern.permute.xlu0 0
    %1418 = vperm.xlu0 %1417, %v1384
    %v1419 = vpop.permute.xlu0 %1418
    %1422 = vset.pattern.permute.xlu0 0
    %1423 = vperm.xlu0 %1422, %v1385
    %v1424 = vpop.permute.xlu0 %1423
    %v1434 = vunpack.c.l.b16 %v1370
    %v1435 = vunpack.c.l.b16 %v1371
    %v1436 = vunpack.c.l.b16 %v1372
    %v1437 = vunpack.c.l.b16 %v1373
    %v1438 = vunpack.c.l.b16 %v1374
    %v1439 = vunpack.c.l.b16 %v1375
    %v1440 = vunpack.c.l.b16 %v1376
    %v1441 = vunpack.c.l.b16 %v1377
    %v1442 = vpack.c.b16 %v1435, %v1434
    %v1443 = vpack.c.b16 %v1437, %v1436
    %v1444 = vpack.c.b16 %v1439, %v1438
    %v1445 = vpack.c.b16 %v1441, %v1440
    %v1447 = vsel %vm875, %v1442, 0
    %v1450 = vsel %vm875, %v1443, 0
    %v1453 = vsel %vm875, %v1444, 0
    %v1456 = vsel %vm875, %v1445, 0
    %1458 = vmatprep.subr.bf16.mxu0 0
    %1459 = vmatpush1.bf16.msra.mxu0 0
    %1460 = vmatprep.subr.bf16.mxu0 0
    %1461 = vmatpush1.bf16.msra.mxu0 0
    %1462 = vmatprep.subr.bf16.mxu0 0
    %1463 = vmatpush1.bf16.msra.mxu0 0
    %1464 = vmatprep.subr.bf16.mxu0 0
    %1465 = vmatpush1.bf16.msra.mxu0 0
    %1466 = vmatprep.subr.bf16.mxu0 %v1367
    %1467 = vmatpush1.bf16.msra.mxu0 %v1366
    %1468 = vmatprep.subr.bf16.mxu0 %v1363
    %1469 = vmatpush1.bf16.msra.mxu0 %v1362
    %1470 = vmatprep.subr.bf16.mxu0 %v1359
    %1471 = vmatpush1.bf16.msra.mxu0 %v1358
    %1472 = vmatprep.subr.bf16.mxu0 %v1355
    %1473 = vmatpush1.bf16.msra.mxu0 %v1354
    %1474 = vmatprep.subr.bf16.mxu0 0
    %1475 = vmatpush2.bf16.msra.mxu0 0
    %1476 = vmatprep.subr.bf16.mxu0 0
    %1477 = vmatpush2.bf16.msra.mxu0 0
    %1478 = vmatprep.subr.bf16.mxu0 0
    %1479 = vmatpush2.bf16.msra.mxu0 0
    %1480 = vmatprep.subr.bf16.mxu0 0
    %1481 = vmatpush2.bf16.msra.mxu0 0
    %1482 = vmatprep.subr.bf16.mxu0 0
    %1483 = vmatpush2.bf16.msra.mxu0 0
    %1484 = vmatprep.subr.bf16.mxu0 0
    %1485 = vmatpush2.bf16.msra.mxu0 0
    %1486 = vmatprep.subr.bf16.mxu0 0
    %1487 = vmatpush2.bf16.msra.mxu0 0
    %1488 = vmatprep.subr.bf16.mxu0 0
    %1489 = vmatpush2.bf16.msra.mxu0 0
    %1490 = vmatprep.mubr.bf16.mxu0 0
    %1491 = vmatmul.mubr.bf16.gmra.mxu0 %v1447
    %v1492 = vpop.f32.mrf.mxu0
    %v1493 = vadd.f32 %v1389, %v1492
    %v1494 = vpop.f32.mrf.mxu0
    %v1495 = vadd.f32 %v1389, %v1494
    %v1496 = vpop.f32.mrf.mxu0
    %v1497 = vadd.f32 %v1394, %v1496
    %v1498 = vpop.f32.mrf.mxu0
    %v1499 = vadd.f32 %v1394, %v1498
    %1500 = vmatprep.mubr.bf16.mxu0 0
    %1501 = vmatmul.mubr.bf16.gmra.mxu0 %v1450
    %v1502 = vpop.f32.mrf.mxu0
    %v1503 = vadd.f32 %v1399, %v1502
    %v1504 = vpop.f32.mrf.mxu0
    %v1505 = vadd.f32 %v1399, %v1504
    %v1506 = vpop.f32.mrf.mxu0
    %v1507 = vadd.f32 %v1404, %v1506
    %v1508 = vpop.f32.mrf.mxu0
    %v1509 = vadd.f32 %v1404, %v1508
    %1510 = vmatprep.mubr.bf16.mxu0 0
    %1511 = vmatmul.mubr.bf16.gmra.mxu0 %v1453
    %v1512 = vpop.f32.mrf.mxu0
    %v1513 = vadd.f32 %v1409, %v1512
    %v1514 = vpop.f32.mrf.mxu0
    %v1515 = vadd.f32 %v1409, %v1514
    %v1516 = vpop.f32.mrf.mxu0
    %v1517 = vadd.f32 %v1414, %v1516
    %v1518 = vpop.f32.mrf.mxu0
    %v1519 = vadd.f32 %v1414, %v1518
    %1520 = vmatprep.mubr.bf16.mxu0 0
    %1521 = vmatmul.mubr.bf16.gmra.mxu0 %v1456
    %v1522 = vpop.f32.mrf.mxu0
    %v1523 = vadd.f32 %v1419, %v1522
    %v1524 = vpop.f32.mrf.mxu0
    %v1525 = vadd.f32 %v1419, %v1524
    %v1526 = vpop.f32.mrf.mxu0
    %v1527 = vadd.f32 %v1424, %v1526
    %v1528 = vpop.f32.mrf.mxu0
    %v1529 = vadd.f32 %v1424, %v1528
    %1530 = vdwg.mxu0
    %1531 = vmatprep.subr.bf16.mxu0 0
    %1532 = vmatpush1.bf16.msra.mxu0 0
    %1533 = vmatprep.subr.bf16.mxu0 0
    %1534 = vmatpush1.bf16.msra.mxu0 0
    %1535 = vmatprep.subr.bf16.mxu0 0
    %1536 = vmatpush1.bf16.msra.mxu0 0
    %1537 = vmatprep.subr.bf16.mxu0 0
    %1538 = vmatpush1.bf16.msra.mxu0 0
    %1539 = vmatprep.subr.bf16.mxu0 %v1369
    %1540 = vmatpush1.bf16.msra.mxu0 %v1368
    %1541 = vmatprep.subr.bf16.mxu0 %v1365
    %1542 = vmatpush1.bf16.msra.mxu0 %v1364
    %1543 = vmatprep.subr.bf16.mxu0 %v1361
    %1544 = vmatpush1.bf16.msra.mxu0 %v1360
    %1545 = vmatprep.subr.bf16.mxu0 %v1357
    %1546 = vmatpush1.bf16.msra.mxu0 %v1356
    %1547 = vmatprep.subr.bf16.mxu0 0
    %1548 = vmatpush2.bf16.msra.mxu0 0
    %1549 = vmatprep.subr.bf16.mxu0 0
    %1550 = vmatpush2.bf16.msra.mxu0 0
    %1551 = vmatprep.subr.bf16.mxu0 0
    %1552 = vmatpush2.bf16.msra.mxu0 0
    %1553 = vmatprep.subr.bf16.mxu0 0
    %1554 = vmatpush2.bf16.msra.mxu0 0
    %1555 = vmatprep.subr.bf16.mxu0 0
    %1556 = vmatpush2.bf16.msra.mxu0 0
    %1557 = vmatprep.subr.bf16.mxu0 0
    %1558 = vmatpush2.bf16.msra.mxu0 0
    %1559 = vmatprep.subr.bf16.mxu0 0
    %1560 = vmatpush2.bf16.msra.mxu0 0
    %1561 = vmatprep.subr.bf16.mxu0 0
    %1562 = vmatpush2.bf16.msra.mxu0 0
    %1563 = vmatprep.mubr.bf16.mxu0 0
    %1564 = vmatmul.mubr.bf16.gmra.mxu0 %v1447
    %v1565 = vpop.f32.mrf.mxu0
    %v1566 = vadd.f32 %v1389, %v1565
    %v1567 = vpop.f32.mrf.mxu0
    %v1568 = vadd.f32 %v1389, %v1567
    %v1569 = vpop.f32.mrf.mxu0
    %v1570 = vadd.f32 %v1394, %v1569
    %v1571 = vpop.f32.mrf.mxu0
    %v1572 = vadd.f32 %v1394, %v1571
    %1573 = vmatprep.mubr.bf16.mxu0 0
    %1574 = vmatmul.mubr.bf16.gmra.mxu0 %v1450
    %v1575 = vpop.f32.mrf.mxu0
    %v1576 = vadd.f32 %v1399, %v1575
    %v1577 = vpop.f32.mrf.mxu0
    %v1578 = vadd.f32 %v1399, %v1577
    %v1579 = vpop.f32.mrf.mxu0
    %v1580 = vadd.f32 %v1404, %v1579
    %v1581 = vpop.f32.mrf.mxu0
    %v1582 = vadd.f32 %v1404, %v1581
    %1583 = vmatprep.mubr.bf16.mxu0 0
    %1584 = vmatmul.mubr.bf16.gmra.mxu0 %v1453
    %v1585 = vpop.f32.mrf.mxu0
    %v1586 = vadd.f32 %v1409, %v1585
    %v1587 = vpop.f32.mrf.mxu0
    %v1588 = vadd.f32 %v1409, %v1587
    %v1589 = vpop.f32.mrf.mxu0
    %v1590 = vadd.f32 %v1414, %v1589
    %v1591 = vpop.f32.mrf.mxu0
    %v1592 = vadd.f32 %v1414, %v1591
    %1593 = vmatprep.mubr.bf16.mxu0 0
    %1594 = vmatmul.mubr.bf16.gmra.mxu0 %v1456
    %v1595 = vpop.f32.mrf.mxu0
    %v1596 = vadd.f32 %v1419, %v1595
    %v1597 = vpop.f32.mrf.mxu0
    %v1598 = vadd.f32 %v1419, %v1597
    %v1599 = vpop.f32.mrf.mxu0
    %v1600 = vadd.f32 %v1424, %v1599
    %v1601 = vpop.f32.mrf.mxu0
    %v1602 = vadd.f32 %v1424, %v1601
    %1603 = vdwg.mxu0
    %v1604 = vmul.f32 %v1493, 1.442695
    %v1605 = vpow.pop %v1604
    %v1606 = vmul.f32 %v1495, 1.442695
    %v1607 = vpow.pop %v1606
    %v1608 = vmul.f32 %v1566, 1.442695
    %v1609 = vpow.pop %v1608
    %v1610 = vmul.f32 %v1568, 1.442695
    %v1611 = vpow.pop %v1610
    %v1612 = vmul.f32 %v1497, 1.442695
    %v1613 = vpow.pop %v1612
    %v1614 = vmul.f32 %v1499, 1.442695
    %v1615 = vpow.pop %v1614
    %v1616 = vmul.f32 %v1570, 1.442695
    %v1617 = vpow.pop %v1616
    %v1618 = vmul.f32 %v1572, 1.442695
    %v1619 = vpow.pop %v1618
    %v1620 = vmul.f32 %v1503, 1.442695
    %v1621 = vpow.pop %v1620
    %v1622 = vmul.f32 %v1505, 1.442695
    %v1623 = vpow.pop %v1622
    %v1624 = vmul.f32 %v1576, 1.442695
    %v1625 = vpow.pop %v1624
    %v1626 = vmul.f32 %v1578, 1.442695
    %v1627 = vpow.pop %v1626
    %v1628 = vmul.f32 %v1507, 1.442695
    %v1629 = vpow.pop %v1628
    %v1630 = vmul.f32 %v1509, 1.442695
    %v1631 = vpow.pop %v1630
    %v1632 = vmul.f32 %v1580, 1.442695
    %v1633 = vpow.pop %v1632
    %v1634 = vmul.f32 %v1582, 1.442695
    %v1635 = vpow.pop %v1634
    %v1636 = vmul.f32 %v1513, 1.442695
    %v1637 = vpow.pop %v1636
    %v1638 = vmul.f32 %v1515, 1.442695
    %v1639 = vpow.pop %v1638
    %v1640 = vmul.f32 %v1586, 1.442695
    %v1641 = vpow.pop %v1640
    %v1642 = vmul.f32 %v1588, 1.442695
    %v1643 = vpow.pop %v1642
    %v1644 = vmul.f32 %v1517, 1.442695
    %v1645 = vpow.pop %v1644
    %v1646 = vmul.f32 %v1519, 1.442695
    %v1647 = vpow.pop %v1646
    %v1648 = vmul.f32 %v1590, 1.442695
    %v1649 = vpow.pop %v1648
    %v1650 = vmul.f32 %v1592, 1.442695
    %v1651 = vpow.pop %v1650
    %v1652 = vmul.f32 %v1523, 1.442695
    %v1653 = vpow.pop %v1652
    %v1654 = vmul.f32 %v1525, 1.442695
    %v1655 = vpow.pop %v1654
    %v1656 = vmul.f32 %v1596, 1.442695
    %v1657 = vpow.pop %v1656
    %v1658 = vmul.f32 %v1598, 1.442695
    %v1659 = vpow.pop %v1658
    %v1660 = vmul.f32 %v1527, 1.442695
    %v1661 = vpow.pop %v1660
    %v1662 = vmul.f32 %v1529, 1.442695
    %v1663 = vpow.pop %v1662
    %v1664 = vmul.f32 %v1600, 1.442695
    %v1665 = vpow.pop %v1664
    %v1666 = vmul.f32 %v1602, 1.442695
    %v1667 = vpow.pop %v1666
    %v1668 = vadd.f32 %v1605, 2.0
    %v1669 = vadd.f32 %v1607, 2.0
    %v1670 = vadd.f32 %v1609, 2.0
    %v1671 = vadd.f32 %v1611, 2.0
    %v1672 = vadd.f32 %v1613, 2.0
    %v1673 = vadd.f32 %v1615, 2.0
    %v1674 = vadd.f32 %v1617, 2.0
    %v1675 = vadd.f32 %v1619, 2.0
    %v1676 = vadd.f32 %v1621, 2.0
    %v1677 = vadd.f32 %v1623, 2.0
    %v1678 = vadd.f32 %v1625, 2.0
    %v1679 = vadd.f32 %v1627, 2.0
    %v1680 = vadd.f32 %v1629, 2.0
    %v1681 = vadd.f32 %v1631, 2.0
    %v1682 = vadd.f32 %v1633, 2.0
    %v1683 = vadd.f32 %v1635, 2.0
    %v1684 = vadd.f32 %v1637, 2.0
    %v1685 = vadd.f32 %v1639, 2.0
    %v1686 = vadd.f32 %v1641, 2.0
    %v1687 = vadd.f32 %v1643, 2.0
    %v1688 = vadd.f32 %v1645, 2.0
    %v1689 = vadd.f32 %v1647, 2.0
    %v1690 = vadd.f32 %v1649, 2.0
    %v1691 = vadd.f32 %v1651, 2.0
    %v1692 = vadd.f32 %v1653, 2.0
    %v1693 = vadd.f32 %v1655, 2.0
    %v1694 = vadd.f32 %v1657, 2.0
    %v1695 = vadd.f32 %v1659, 2.0
    %v1696 = vadd.f32 %v1661, 2.0
    %v1697 = vadd.f32 %v1663, 2.0
    %v1698 = vadd.f32 %v1665, 2.0
    %v1699 = vadd.f32 %v1667, 2.0
    %v1700 = vmul.f32 %v1605, %v1668
    %v1701 = vmul.f32 %v1607, %v1669
    %v1702 = vmul.f32 %v1609, %v1670
    %v1703 = vmul.f32 %v1611, %v1671
    %v1704 = vmul.f32 %v1613, %v1672
    %v1705 = vmul.f32 %v1615, %v1673
    %v1706 = vmul.f32 %v1617, %v1674
    %v1707 = vmul.f32 %v1619, %v1675
    %v1708 = vmul.f32 %v1621, %v1676
    %v1709 = vmul.f32 %v1623, %v1677
    %v1710 = vmul.f32 %v1625, %v1678
    %v1711 = vmul.f32 %v1627, %v1679
    %v1712 = vmul.f32 %v1629, %v1680
    %v1713 = vmul.f32 %v1631, %v1681
    %v1714 = vmul.f32 %v1633, %v1682
    %v1715 = vmul.f32 %v1635, %v1683
    %v1716 = vmul.f32 %v1637, %v1684
    %v1717 = vmul.f32 %v1639, %v1685
    %v1718 = vmul.f32 %v1641, %v1686
    %v1719 = vmul.f32 %v1643, %v1687
    %v1720 = vmul.f32 %v1645, %v1688
    %v1721 = vmul.f32 %v1647, %v1689
    %v1722 = vmul.f32 %v1649, %v1690
    %v1723 = vmul.f32 %v1651, %v1691
    %v1724 = vmul.f32 %v1653, %v1692
    %v1725 = vmul.f32 %v1655, %v1693
    %v1726 = vmul.f32 %v1657, %v1694
    %v1727 = vmul.f32 %v1659, %v1695
    %v1728 = vmul.f32 %v1661, %v1696
    %v1729 = vmul.f32 %v1663, %v1697
    %v1730 = vmul.f32 %v1665, %v1698
    %v1731 = vmul.f32 %v1667, %v1699
    %v1732 = vmul.f32 %v1493, %v1700
    %v1733 = vmul.f32 %v1495, %v1701
    %v1734 = vmul.f32 %v1566, %v1702
    %v1735 = vmul.f32 %v1568, %v1703
    %v1736 = vmul.f32 %v1497, %v1704
    %v1737 = vmul.f32 %v1499, %v1705
    %v1738 = vmul.f32 %v1570, %v1706
    %v1739 = vmul.f32 %v1572, %v1707
    %v1740 = vmul.f32 %v1503, %v1708
    %v1741 = vmul.f32 %v1505, %v1709
    %v1742 = vmul.f32 %v1576, %v1710
    %v1743 = vmul.f32 %v1578, %v1711
    %v1744 = vmul.f32 %v1507, %v1712
    %v1745 = vmul.f32 %v1509, %v1713
    %v1746 = vmul.f32 %v1580, %v1714
    %v1747 = vmul.f32 %v1582, %v1715
    %v1748 = vmul.f32 %v1513, %v1716
    %v1749 = vmul.f32 %v1515, %v1717
    %v1750 = vmul.f32 %v1586, %v1718
    %v1751 = vmul.f32 %v1588, %v1719
    %v1752 = vmul.f32 %v1517, %v1720
    %v1753 = vmul.f32 %v1519, %v1721
    %v1754 = vmul.f32 %v1590, %v1722
    %v1755 = vmul.f32 %v1592, %v1723
    %v1756 = vmul.f32 %v1523, %v1724
    %v1757 = vmul.f32 %v1525, %v1725
    %v1758 = vmul.f32 %v1596, %v1726
    %v1759 = vmul.f32 %v1598, %v1727
    %v1760 = vmul.f32 %v1527, %v1728
    %v1761 = vmul.f32 %v1529, %v1729
    %v1762 = vmul.f32 %v1600, %v1730
    %v1763 = vmul.f32 %v1602, %v1731
    %v1764 = vadd.f32 %v1700, 2.0
    %v1765 = vadd.f32 %v1701, 2.0
    %v1766 = vadd.f32 %v1702, 2.0
    %v1767 = vadd.f32 %v1703, 2.0
    %v1768 = vadd.f32 %v1704, 2.0
    %v1769 = vadd.f32 %v1705, 2.0
    %v1770 = vadd.f32 %v1706, 2.0
    %v1771 = vadd.f32 %v1707, 2.0
    %v1772 = vadd.f32 %v1708, 2.0
    %v1773 = vadd.f32 %v1709, 2.0
    %v1774 = vadd.f32 %v1710, 2.0
    %v1775 = vadd.f32 %v1711, 2.0
    %v1776 = vadd.f32 %v1712, 2.0
    %v1777 = vadd.f32 %v1713, 2.0
    %v1778 = vadd.f32 %v1714, 2.0
    %v1779 = vadd.f32 %v1715, 2.0
    %v1780 = vadd.f32 %v1716, 2.0
    %v1781 = vadd.f32 %v1717, 2.0
    %v1782 = vadd.f32 %v1718, 2.0
    %v1783 = vadd.f32 %v1719, 2.0
    %v1784 = vadd.f32 %v1720, 2.0
    %v1785 = vadd.f32 %v1721, 2.0
    %v1786 = vadd.f32 %v1722, 2.0
    %v1787 = vadd.f32 %v1723, 2.0
    %v1788 = vadd.f32 %v1724, 2.0
    %v1789 = vadd.f32 %v1725, 2.0
    %v1790 = vadd.f32 %v1726, 2.0
    %v1791 = vadd.f32 %v1727, 2.0
    %v1792 = vadd.f32 %v1728, 2.0
    %v1793 = vadd.f32 %v1729, 2.0
    %v1794 = vadd.f32 %v1730, 2.0
    %v1795 = vadd.f32 %v1731, 2.0
    %v1796 = vrcp.pop %v1764
    %v1797 = vrcp.pop %v1765
    %v1798 = vrcp.pop %v1766
    %v1799 = vrcp.pop %v1767
    %v1800 = vrcp.pop %v1768
    %v1801 = vrcp.pop %v1769
    %v1802 = vrcp.pop %v1770
    %v1803 = vrcp.pop %v1771
    %v1804 = vrcp.pop %v1772
    %v1805 = vrcp.pop %v1773
    %v1806 = vrcp.pop %v1774
    %v1807 = vrcp.pop %v1775
    %v1808 = vrcp.pop %v1776
    %v1809 = vrcp.pop %v1777
    %v1810 = vrcp.pop %v1778
    %v1811 = vrcp.pop %v1779
    %v1812 = vrcp.pop %v1780
    %v1813 = vrcp.pop %v1781
    %v1814 = vrcp.pop %v1782
    %v1815 = vrcp.pop %v1783
    %v1816 = vrcp.pop %v1784
    %v1817 = vrcp.pop %v1785
    %v1818 = vrcp.pop %v1786
    %v1819 = vrcp.pop %v1787
    %v1820 = vrcp.pop %v1788
    %v1821 = vrcp.pop %v1789
    %v1822 = vrcp.pop %v1790
    %v1823 = vrcp.pop %v1791
    %v1824 = vrcp.pop %v1792
    %v1825 = vrcp.pop %v1793
    %v1826 = vrcp.pop %v1794
    %v1827 = vrcp.pop %v1795
    %v1828 = vmul.f32 %v1732, %v1796
    %v1829 = vmul.f32 %v1733, %v1797
    %v1830 = vmul.f32 %v1734, %v1798
    %v1831 = vmul.f32 %v1735, %v1799
    %v1832 = vmul.f32 %v1736, %v1800
    %v1833 = vmul.f32 %v1737, %v1801
    %v1834 = vmul.f32 %v1738, %v1802
    %v1835 = vmul.f32 %v1739, %v1803
    %v1836 = vmul.f32 %v1740, %v1804
    %v1837 = vmul.f32 %v1741, %v1805
    %v1838 = vmul.f32 %v1742, %v1806
    %v1839 = vmul.f32 %v1743, %v1807
    %v1840 = vmul.f32 %v1744, %v1808
    %v1841 = vmul.f32 %v1745, %v1809
    %v1842 = vmul.f32 %v1746, %v1810
    %v1843 = vmul.f32 %v1747, %v1811
    %v1844 = vmul.f32 %v1748, %v1812
    %v1845 = vmul.f32 %v1749, %v1813
    %v1846 = vmul.f32 %v1750, %v1814
    %v1847 = vmul.f32 %v1751, %v1815
    %v1848 = vmul.f32 %v1752, %v1816
    %v1849 = vmul.f32 %v1753, %v1817
    %v1850 = vmul.f32 %v1754, %v1818
    %v1851 = vmul.f32 %v1755, %v1819
    %v1852 = vmul.f32 %v1756, %v1820
    %v1853 = vmul.f32 %v1757, %v1821
    %v1854 = vmul.f32 %v1758, %v1822
    %v1855 = vmul.f32 %v1759, %v1823
    %v1856 = vmul.f32 %v1760, %v1824
    %v1857 = vmul.f32 %v1761, %v1825
    %v1858 = vmul.f32 %v1762, %v1826
    %v1859 = vmul.f32 %v1763, %v1827
    %vm1860 = vcmp.gt.f32.partialorder %v1493, 20.0
    %vm1861 = vcmp.gt.f32.partialorder %v1495, 20.0
    %vm1862 = vcmp.gt.f32.partialorder %v1566, 20.0
    %vm1863 = vcmp.gt.f32.partialorder %v1568, 20.0
    %vm1864 = vcmp.gt.f32.partialorder %v1497, 20.0
    %vm1865 = vcmp.gt.f32.partialorder %v1499, 20.0
    %vm1866 = vcmp.gt.f32.partialorder %v1570, 20.0
    %vm1867 = vcmp.gt.f32.partialorder %v1572, 20.0
    %vm1868 = vcmp.gt.f32.partialorder %v1503, 20.0
    %vm1869 = vcmp.gt.f32.partialorder %v1505, 20.0
    %vm1870 = vcmp.gt.f32.partialorder %v1576, 20.0
    %vm1871 = vcmp.gt.f32.partialorder %v1578, 20.0
    %vm1872 = vcmp.gt.f32.partialorder %v1507, 20.0
    %vm1873 = vcmp.gt.f32.partialorder %v1509, 20.0
    %vm1874 = vcmp.gt.f32.partialorder %v1580, 20.0
    %vm1875 = vcmp.gt.f32.partialorder %v1582, 20.0
    %vm1876 = vcmp.gt.f32.partialorder %v1513, 20.0
    %vm1877 = vcmp.gt.f32.partialorder %v1515, 20.0
    %vm1878 = vcmp.gt.f32.partialorder %v1586, 20.0
    %vm1879 = vcmp.gt.f32.partialorder %v1588, 20.0
    %vm1880 = vcmp.gt.f32.partialorder %v1517, 20.0
    %vm1881 = vcmp.gt.f32.partialorder %v1519, 20.0
    %vm1882 = vcmp.gt.f32.partialorder %v1590, 20.0
    %vm1883 = vcmp.gt.f32.partialorder %v1592, 20.0
    %vm1884 = vcmp.gt.f32.partialorder %v1523, 20.0
    %vm1885 = vcmp.gt.f32.partialorder %v1525, 20.0
    %vm1886 = vcmp.gt.f32.partialorder %v1596, 20.0
    %vm1887 = vcmp.gt.f32.partialorder %v1598, 20.0
    %vm1888 = vcmp.gt.f32.partialorder %v1527, 20.0
    %vm1889 = vcmp.gt.f32.partialorder %v1529, 20.0
    %vm1890 = vcmp.gt.f32.partialorder %v1600, 20.0
    %vm1891 = vcmp.gt.f32.partialorder %v1602, 20.0
    %v1892 = vsel %vm1860, %v1493, %v1828
    %v1893 = vsel %vm1861, %v1495, %v1829
    %v1894 = vsel %vm1862, %v1566, %v1830
    %v1895 = vsel %vm1863, %v1568, %v1831
    %v1896 = vsel %vm1864, %v1497, %v1832
    %v1897 = vsel %vm1865, %v1499, %v1833
    %v1898 = vsel %vm1866, %v1570, %v1834
    %v1899 = vsel %vm1867, %v1572, %v1835
    %v1900 = vsel %vm1868, %v1503, %v1836
    %v1901 = vsel %vm1869, %v1505, %v1837
    %v1902 = vsel %vm1870, %v1576, %v1838
    %v1903 = vsel %vm1871, %v1578, %v1839
    %v1904 = vsel %vm1872, %v1507, %v1840
    %v1905 = vsel %vm1873, %v1509, %v1841
    %v1906 = vsel %vm1874, %v1580, %v1842
    %v1907 = vsel %vm1875, %v1582, %v1843
    %v1908 = vsel %vm1876, %v1513, %v1844
    %v1909 = vsel %vm1877, %v1515, %v1845
    %v1910 = vsel %vm1878, %v1586, %v1846
    %v1911 = vsel %vm1879, %v1588, %v1847
    %v1912 = vsel %vm1880, %v1517, %v1848
    %v1913 = vsel %vm1881, %v1519, %v1849
    %v1914 = vsel %vm1882, %v1590, %v1850
    %v1915 = vsel %vm1883, %v1592, %v1851
    %v1916 = vsel %vm1884, %v1523, %v1852
    %v1917 = vsel %vm1885, %v1525, %v1853
    %v1918 = vsel %vm1886, %v1596, %v1854
    %v1919 = vsel %vm1887, %v1598, %v1855
    %v1920 = vsel %vm1888, %v1527, %v1856
    %v1921 = vsel %vm1889, %v1529, %v1857
    %v1922 = vsel %vm1890, %v1600, %v1858
    %v1923 = vsel %vm1891, %v1602, %v1859
    %v1924 = vpack.c.bf16 %v1896, %v1892
    %v1925 = vpack.c.bf16 %v1897, %v1893
    %v1926 = vpack.c.bf16 %v1898, %v1894
    %v1927 = vpack.c.bf16 %v1899, %v1895
    %v1928 = vpack.c.bf16 %v1904, %v1900
    %v1929 = vpack.c.bf16 %v1905, %v1901
    %v1930 = vpack.c.bf16 %v1906, %v1902
    %v1931 = vpack.c.bf16 %v1907, %v1903
    %v1932 = vpack.c.bf16 %v1912, %v1908
    %v1933 = vpack.c.bf16 %v1913, %v1909
    %v1934 = vpack.c.bf16 %v1914, %v1910
    %v1935 = vpack.c.bf16 %v1915, %v1911
    %v1936 = vpack.c.bf16 %v1920, %v1916
    %v1937 = vpack.c.bf16 %v1921, %v1917
    %v1938 = vpack.c.bf16 %v1922, %v1918
    %v1939 = vpack.c.bf16 %v1923, %v1919
    %v1940 = vld [vmem:[%s7] sm:$0xff]
    %v1941 = vld [vmem:[%s7 + $0x8] sm:$0xff]
    %v1942 = vld [vmem:[%s7 + $0x10] sm:$0xff]
    %v1943 = vld [vmem:[%s7 + $0x18] sm:$0xff]
    %v1944 = vld [vmem:[%s7 + $0x20] sm:$0xff]
    %v1945 = vld [vmem:[%s7 + $0x28] sm:$0xff]
    %v1946 = vld [vmem:[%s7 + $0x30] sm:$0xff]
    %v1947 = vld [vmem:[%s7 + $0x38] sm:$0xff]
    %v1948 = vunpack.c.l.bf16 %v1924
    %v1949 = vunpack.c.l.bf16 %v1925
    %v1950 = vunpack.c.l.bf16 %v1926
    %v1951 = vunpack.c.l.bf16 %v1927
    %v1952 = vunpack.c.h.bf16 %v1924
    %v1953 = vunpack.c.h.bf16 %v1925
    %v1954 = vunpack.c.h.bf16 %v1926
    %v1955 = vunpack.c.h.bf16 %v1927
    %v1956 = vunpack.c.l.bf16 %v1928
    %v1957 = vunpack.c.l.bf16 %v1929
    %v1958 = vunpack.c.l.bf16 %v1930
    %v1959 = vunpack.c.l.bf16 %v1931
    %v1960 = vunpack.c.h.bf16 %v1928
    %v1961 = vunpack.c.h.bf16 %v1929
    %v1962 = vunpack.c.h.bf16 %v1930
    %v1963 = vunpack.c.h.bf16 %v1931
    %v1964 = vunpack.c.l.bf16 %v1932
    %v1965 = vunpack.c.l.bf16 %v1933
    %v1966 = vunpack.c.l.bf16 %v1934
    %v1967 = vunpack.c.l.bf16 %v1935
    %v1968 = vunpack.c.h.bf16 %v1932
    %v1969 = vunpack.c.h.bf16 %v1933
    %v1970 = vunpack.c.h.bf16 %v1934
    %v1971 = vunpack.c.h.bf16 %v1935
    %v1972 = vunpack.c.l.bf16 %v1936
    %v1973 = vunpack.c.l.bf16 %v1937
    %v1974 = vunpack.c.l.bf16 %v1938
    %v1975 = vunpack.c.l.bf16 %v1939
    %v1976 = vunpack.c.h.bf16 %v1936
    %v1977 = vunpack.c.h.bf16 %v1937
    %v1978 = vunpack.c.h.bf16 %v1938
    %v1979 = vunpack.c.h.bf16 %v1939
    %1981 = vset.pattern.permute.xlu0 0
    %1982 = vperm.xlu0 %1981, %v1940
    %v1983 = vpop.permute.xlu0 %1982
    %1986 = vset.pattern.permute.xlu0 0
    %1987 = vperm.xlu0 %1986, %v1941
    %v1988 = vpop.permute.xlu0 %1987
    %1991 = vset.pattern.permute.xlu0 0
    %1992 = vperm.xlu0 %1991, %v1942
    %v1993 = vpop.permute.xlu0 %1992
    %1996 = vset.pattern.permute.xlu0 0
    %1997 = vperm.xlu0 %1996, %v1943
    %v1998 = vpop.permute.xlu0 %1997
    %2001 = vset.pattern.permute.xlu0 0
    %2002 = vperm.xlu0 %2001, %v1944
    %v2003 = vpop.permute.xlu0 %2002
    %2006 = vset.pattern.permute.xlu0 0
    %2007 = vperm.xlu0 %2006, %v1945
    %v2008 = vpop.permute.xlu0 %2007
    %2011 = vset.pattern.permute.xlu0 0
    %2012 = vperm.xlu0 %2011, %v1946
    %v2013 = vpop.permute.xlu0 %2012
    %2016 = vset.pattern.permute.xlu0 0
    %2017 = vperm.xlu0 %2016, %v1947
    %v2018 = vpop.permute.xlu0 %2017
    %v2020 = vmul.f32 %v1948, %v1983
    %v2021 = vmul.f32 %v1949, %v1983
    %v2022 = vmul.f32 %v1950, %v1983
    %v2023 = vmul.f32 %v1951, %v1983
    %v2024 = vmul.f32 %v1952, %v1988
    %v2025 = vmul.f32 %v1953, %v1988
    %v2026 = vmul.f32 %v1954, %v1988
    %v2027 = vmul.f32 %v1955, %v1988
    %v2028 = vmul.f32 %v1956, %v1993
    %v2029 = vmul.f32 %v1957, %v1993
    %v2030 = vmul.f32 %v1958, %v1993
    %v2031 = vmul.f32 %v1959, %v1993
    %v2032 = vmul.f32 %v1960, %v1998
    %v2033 = vmul.f32 %v1961, %v1998
    %v2034 = vmul.f32 %v1962, %v1998
    %v2035 = vmul.f32 %v1963, %v1998
    %v2036 = vmul.f32 %v1964, %v2003
    %v2037 = vmul.f32 %v1965, %v2003
    %v2038 = vmul.f32 %v1966, %v2003
    %v2039 = vmul.f32 %v1967, %v2003
    %v2040 = vmul.f32 %v1968, %v2008
    %v2041 = vmul.f32 %v1969, %v2008
    %v2042 = vmul.f32 %v1970, %v2008
    %v2043 = vmul.f32 %v1971, %v2008
    %v2044 = vmul.f32 %v1972, %v2013
    %v2045 = vmul.f32 %v1973, %v2013
    %v2046 = vmul.f32 %v1974, %v2013
    %v2047 = vmul.f32 %v1975, %v2013
    %v2048 = vmul.f32 %v1976, %v2018
    %v2049 = vmul.f32 %v1977, %v2018
    %v2050 = vmul.f32 %v1978, %v2018
    %v2051 = vmul.f32 %v1979, %v2018
    %v2052 = vadd.f32 %v2020, %v2024
    %v2053 = vadd.f32 %v2052, %v2028
    %v2054 = vadd.f32 %v2053, %v2032
    %v2055 = vadd.f32 %v2054, %v2036
    %v2056 = vadd.f32 %v2055, %v2040
    %v2057 = vadd.f32 %v2056, %v2044
    %v2058 = vadd.f32 %v2057, %v2048
    %v2059 = vrot.slane %v2058, 4
    %v2060 = vadd.f32 %v2058, %v2059
    %v2061 = vrot.slane %v2060, 2
    %v2062 = vadd.f32 %v2060, %v2061
    %v2063 = vrot.slane %v2062, 1
    %v2064 = vadd.f32 %v2062, %v2063
    %v2065 = vadd.f32 %v2021, %v2025
    %v2066 = vadd.f32 %v2065, %v2029
    %v2067 = vadd.f32 %v2066, %v2033
    %v2068 = vadd.f32 %v2067, %v2037
    %v2069 = vadd.f32 %v2068, %v2041
    %v2070 = vadd.f32 %v2069, %v2045
    %v2071 = vadd.f32 %v2070, %v2049
    %v2072 = vrot.slane %v2071, 4
    %v2073 = vadd.f32 %v2071, %v2072
    %v2074 = vrot.slane %v2073, 2
    %v2075 = vadd.f32 %v2073, %v2074
    %v2076 = vrot.slane %v2075, 1
    %v2077 = vadd.f32 %v2075, %v2076
    %v2078 = vadd.f32 %v2022, %v2026
    %v2079 = vadd.f32 %v2078, %v2030
    %v2080 = vadd.f32 %v2079, %v2034
    %v2081 = vadd.f32 %v2080, %v2038
    %v2082 = vadd.f32 %v2081, %v2042
    %v2083 = vadd.f32 %v2082, %v2046
    %v2084 = vadd.f32 %v2083, %v2050
    %v2085 = vrot.slane %v2084, 4
    %v2086 = vadd.f32 %v2084, %v2085
    %v2087 = vrot.slane %v2086, 2
    %v2088 = vadd.f32 %v2086, %v2087
    %v2089 = vrot.slane %v2088, 1
    %v2090 = vadd.f32 %v2088, %v2089
    %v2091 = vadd.f32 %v2023, %v2027
    %v2092 = vadd.f32 %v2091, %v2031
    %v2093 = vadd.f32 %v2092, %v2035
    %v2094 = vadd.f32 %v2093, %v2039
    %v2095 = vadd.f32 %v2094, %v2043
    %v2096 = vadd.f32 %v2095, %v2047
    %v2097 = vadd.f32 %v2096, %v2051
    %v2098 = vrot.slane %v2097, 4
    %v2099 = vadd.f32 %v2097, %v2098
    %v2100 = vrot.slane %v2099, 2
    %v2101 = vadd.f32 %v2099, %v2100
    %v2102 = vrot.slane %v2101, 1
    %v2103 = vadd.f32 %v2101, %v2102
    %v2104 = vld [vmem:[#allocation2] sm:$0x1]
    %2106 = vset.pattern.permute.xlu0 0
    %2107 = vperm.xlu0 %2106, %v2104
    %v2108 = vpop.permute.xlu0 %2107
    %v2110 = vlaneseq
    %v2111 = vshrl.u32 %v2110, 7
    %v2112 = vsub.s32 0, %v2111
    %v2113 = vrot.slane %v2108, %v2112
    %v2114 = vadd.f32 %v2064, %v2113
    %v2115 = vadd.f32 %v2077, %v2113
    %v2116 = vadd.f32 %v2090, %v2113
    %v2117 = vadd.f32 %v2103, %v2113
    %v2122 = vcombine.low %v2114, %v2115
    %v2123 = vcombine.low %v2116, %v2117
    %v2125 = vunpack.c.l.s4 1966171168
    %v2126 = vunpack.c.0.s8 %v2125
    %v2127 = vlaneseq
    %v2128 = vshrl.u32 %v2127, 7
    %v2129 = vsub.s32 %v2126, %v2128
    %v2130 = vrot.slane %v2122, %v2129
    %v2132 = vunpack.c.l.s4 1966171168
    %v2133 = vunpack.c.0.s8 %v2132
    %v2134 = vlaneseq
    %v2135 = vshrl.u32 %v2134, 7
    %v2136 = vsub.s32 %v2133, %v2135
    %v2137 = vrot.slane %v2123, %v2136
    %v2138 = vcombine.low %v2130, %v2137
    %v2140 = vunpack.c.l.s4 1966171168
    %v2141 = vunpack.c.0.s8 %v2140
    %v2142 = vlaneseq
    %v2143 = vshrl.u32 %v2142, 7
    %v2144 = vsub.s32 %v2141, %v2143
    %v2145 = vrot.slane %v2138, %v2144
    %v2147 = vlaneseq
    %vm2148 = vcmp.ge.s32.totalorder %v2147, 0
    %vm2149 = vcmp.lt.s32.totalorder %v2147, 512
    %vm2150 = vmand %vm2148, %vm2149
    %2151 = vst.msk [vmem:[#allocation3] sm:$0xf] %vm2150, %v2145
    // Predicated region
    $region38: #{dense_net_forward.1} parent=1 // pred_check
      _
    $region39: #{dense_net_forward.1} parent=1 // pred_check_branch
      %2153 = sbr.rel (0) target = $region41
    $region40: #{dense_net_forward.1} parent=1 // pred_region
      %s2155 = ssub.s32 64, 64
      %2156 = vsyncadd [#allocation4], %s2155
      %s2158 = sshll.u32 [#allocation3], 4
      %s2159 = int_to_ptr.vmem [resolvable:$true] %s2158
      %2161 = dma.vmem_to_hbm [thread:$0]  %s2159, 64, %s9, [#allocation4]
    $region41: #{dense_net_forward.1} parent=1 // pred_fallthru
      _
    // Predicated region
    $region42: #{dense_net_forward.1} parent=1 // pred_check
      _
    $region43: #{dense_net_forward.1} parent=1 // pred_check_branch
      %2163 = sbr.rel (0) target = $region45
    $region44: #{dense_net_forward.1} parent=1 // pred_region
      %2164 = dma.done [#allocation4], 64
    $region45: #{dense_net_forward.1} parent=1 // pred_fallthru
      _
    %2165 = vsyncpa [#allocation4], 1

</llo_original>
